<compile_context>
chip_gen: v6e
topology: v6e:2x2x1
jax: 0.10.0
libtpu: 0.0.40
codegen_flags: <defaults>
</compile_context>

<pallas_src>
import functools

import jax
import jax.numpy as jnp
from jax.experimental import pallas as pl
from jax.experimental.pallas import tpu as pltpu

KH = KW = 4
STRIDE = 2
PAD = 1
EPS = 1e-5
NEG_SLOPE = 0.2

_VMEM_LIMIT = 32 * 1024 * 1024          # safe on v5e/v6e/v7x (v7x has 64 MiB total)
_FUSE_SCRATCH_BUDGET = 8 * 1024 * 1024  # max bytes for the whole-layer y VMEM scratch
_TILE_BUDGET = 8 * 1024 * 1024          # per-tile working-set budget
_MAX_TILE_P = 2048


def _round_up(x, m):
    return ((x + m - 1) // m) * m


# ---------------------------------------------------------------------------
# Pallas kernels
# ---------------------------------------------------------------------------
def _fused_block_kernel(p_true, patches_ref, w_ref, gamma_ref, beta_ref,
                        out_ref, y_ref, sum_ref, ssq_ref, scale_ref, shift_ref):
    """Two-phase fused conv(im2col matmul) + global BatchNorm + LeakyReLU.

    grid = (2, n_tiles):
      phase 0: matmul -> y kept in VMEM scratch; accumulate global sum / ssq.
      phase 1: (step 0) derive scale/shift from global stats; apply BN + act,
               store bf16 activation.
    """
    ph = pl.program_id(0)
    i = pl.program_id(1)
    tp = patches_ref.shape[0]

    @pl.when((ph == 0) & (i == 0))
    def _():
        sum_ref[...] = jnp.zeros_like(sum_ref)
        ssq_ref[...] = jnp.zeros_like(ssq_ref)

    @pl.when(ph == 0)
    def _():
        y = jnp.dot(patches_ref[...], w_ref[...],
                    preferred_element_type=jnp.float32)
        start = pl.multiple_of(i * tp, tp)
        y_ref[pl.ds(start, tp), :] = y
        sum_ref[...] += jnp.sum(y, axis=0, keepdims=True)
        ssq_ref[...] += jnp.sum(y * y, axis=0, keepdims=True)

    @pl.when((ph == 1) & (i == 0))
    def _():
        mean = sum_ref[...] * (1.0 / p_true)
        var = jnp.maximum(ssq_ref[...] * (1.0 / p_true) - mean * mean, 0.0)
        inv = jax.lax.rsqrt(var + EPS)
        sc = gamma_ref[...] * inv
        scale_ref[...] = sc
        shift_ref[...] = beta_ref[...] - mean * sc

    @pl.when(ph == 1)
    def _():
        start = pl.multiple_of(i * tp, tp)
        z = y_ref[pl.ds(start, tp), :] * scale_ref[...] + shift_ref[...]
        out_ref[...] = jnp.where(z >= 0, z, NEG_SLOPE * z).astype(out_ref.dtype)


def _stats_kernel(p_ref, w_ref, y_ref, sum_ref, ssq_ref):
    """Fallback (large-P) path: matmul + global stats only; y emitted as bf16.
    BN + LeakyReLU are applied in plain jnp glue (fused by XLA into the next
    layer's im2col)."""
    @pl.when(pl.program_id(0) == 0)
    def _():
        sum_ref[...] = jnp.zeros_like(sum_ref)
        ssq_ref[...] = jnp.zeros_like(ssq_ref)

    y = jnp.dot(p_ref[...], w_ref[...], preferred_element_type=jnp.float32)
    y_ref[...] = y.astype(y_ref.dtype)
    sum_ref[...] += jnp.sum(y, axis=0, keepdims=True)
    ssq_ref[...] += jnp.sum(y * y, axis=0, keepdims=True)


def _head_kernel(p_ref, w_ref, o_ref):
    # p_ref: [P, K] bf16   w_ref: [K, 1] bf16   o_ref: [P, 1] f32
    y = jnp.dot(p_ref[...], w_ref[...], preferred_element_type=jnp.float32)
    o_ref[...] = jax.nn.sigmoid(y)


# ---------------------------------------------------------------------------
# pallas_call wrappers
# ---------------------------------------------------------------------------
def _choose_tile_p(p, k, co):
    """Largest P tile (multiple of 16, <= 2048) whose working set (double
    buffered bf16 patch / bf16 out tiles + per-row f32 y scratch, lane-padded)
    stays well under the scoped VMEM limit on every generation."""
    lane_co = _round_up(co, 128)
    bytes_per_row = 2 * (2 * k) + 2 * (2 * lane_co) + 4 * lane_co
    tile = _TILE_BUDGET // max(bytes_per_row, 1)
    tile = max(16, min(_MAX_TILE_P, (tile // 16) * 16))
    return min(tile, _round_up(p, 16))


def _run_fused_block(patches, w_kco, gamma, beta, tile_p, p_true):
    p_pad, k = patches.shape
    co = w_kco.shape[1]
    n_tiles = p_pad // tile_p
    flops = 2 * p_pad * k * co + 8 * p_pad * co
    bytes_accessed = p_pad * k * 2 + k * co * 2 + p_pad * co * 2 + 4 * co * 4
    kernel = functools.partial(_fused_block_kernel, float(p_true))
    return pl.pallas_call(
        kernel,
        out_shape=jax.ShapeDtypeStruct((p_pad, co), jnp.bfloat16),
        grid=(2, n_tiles),
        in_specs=[
            # patches are only needed in phase 0; pin block 0 during phase 1 so
            # the pipeline stops re-fetching them.
            pl.BlockSpec((tile_p, k), lambda ph, i: (i * (1 - ph), 0)),
            pl.BlockSpec((k, co), lambda ph, i: (0, 0)),
            pl.BlockSpec((1, co), lambda ph, i: (0, 0)),
            pl.BlockSpec((1, co), lambda ph, i: (0, 0)),
        ],
        # output only materializes in phase 1; keep block index 0 during phase 0
        # so no garbage tile is ever flushed to HBM.
        out_specs=pl.BlockSpec((tile_p, co), lambda ph, i: (i * ph, 0)),
        scratch_shapes=[
            pltpu.VMEM((p_pad, co), jnp.float32),  # y, resident across both phases
            pltpu.VMEM((1, co), jnp.float32),      # sum
            pltpu.VMEM((1, co), jnp.float32),      # sum of squares
            pltpu.VMEM((1, co), jnp.float32),      # scale
            pltpu.VMEM((1, co), jnp.float32),      # shift
        ],
        compiler_params=pltpu.CompilerParams(
            dimension_semantics=("arbitrary", "arbitrary"),
            vmem_limit_bytes=_VMEM_LIMIT,
        ),
        cost_estimate=pl.CostEstimate(
            flops=flops, transcendentals=2 * co, bytes_accessed=bytes_accessed),
    )(patches, w_kco, gamma, beta)


def _run_stats(patches, w_kco, tile_p):
    p_pad, k = patches.shape
    co = w_kco.shape[1]
    grid = (p_pad // tile_p,)
    flops = 2 * p_pad * k * co
    bytes_accessed = p_pad * k * 2 + k * co * 2 + p_pad * co * 2 + 2 * co * 4
    return pl.pallas_call(
        _stats_kernel,
        out_shape=(
            jax.ShapeDtypeStruct((p_pad, co), jnp.bfloat16),  # y (bf16 intermediate)
            jax.ShapeDtypeStruct((1, co), jnp.float32),       # sum
            jax.ShapeDtypeStruct((1, co), jnp.float32),       # sum of squares
        ),
        grid=grid,
        in_specs=[
            pl.BlockSpec((tile_p, k), lambda i: (i, 0)),
            pl.BlockSpec((k, co), lambda i: (0, 0)),
        ],
        out_specs=(
            pl.BlockSpec((tile_p, co), lambda i: (i, 0)),
            pl.BlockSpec((1, co), lambda i: (0, 0)),
            pl.BlockSpec((1, co), lambda i: (0, 0)),
        ),
        compiler_params=pltpu.CompilerParams(
            dimension_semantics=("arbitrary",),   # sequential: stats accumulator
            vmem_limit_bytes=_VMEM_LIMIT,
        ),
        cost_estimate=pl.CostEstimate(
            flops=flops, transcendentals=0, bytes_accessed=bytes_accessed),
    )(patches, w_kco)


def _run_head(patches, w_k1):
    p_pad, k = patches.shape
    return pl.pallas_call(
        _head_kernel,
        out_shape=jax.ShapeDtypeStruct((p_pad, 1), jnp.float32),
        grid=(1,),
        in_specs=[
            pl.BlockSpec((p_pad, k), lambda i: (0, 0)),
            pl.BlockSpec((k, 1), lambda i: (0, 0)),
        ],
        out_specs=pl.BlockSpec((p_pad, 1), lambda i: (0, 0)),
        compiler_params=pltpu.CompilerParams(
            dimension_semantics=("arbitrary",),
            vmem_limit_bytes=_VMEM_LIMIT,
        ),
        cost_estimate=pl.CostEstimate(
            flops=2 * p_pad * k, transcendentals=p_pad,
            bytes_accessed=p_pad * k * 2 + k * 2 + p_pad * 4),
    )(patches, w_k1)


# ---------------------------------------------------------------------------
# Glue: NHWC im2col, parameter construction, full forward
# ---------------------------------------------------------------------------
def _extract_patches_nhwc(x_nhwc):
    """im2col for a 4x4 / stride-2 / pad-1 conv, NHWC input.
    Returns ([N*Ho*Wo, KH*KW*C] bf16, Ho, Wo) with K ordered (kh, kw, c)."""
    n, h, w, c = x_nhwc.shape
    xp = jnp.pad(x_nhwc, ((0, 0), (PAD, PAD), (PAD, PAD), (0, 0)))
    ho = (h + 2 * PAD - KH) // STRIDE + 1
    wo = (w + 2 * PAD - KW) // STRIDE + 1
    cols = []
    for dh in range(KH):
        for dw in range(KW):
            cols.append(xp[:, dh:dh + STRIDE * ho:STRIDE, dw:dw + STRIDE * wo:STRIDE, :])
    pt = jnp.stack(cols, axis=3)                       # [N, Ho, Wo, KH*KW, C]
    patches = pt.reshape(n * ho * wo, KH * KW * c).astype(jnp.bfloat16)
    return patches, ho, wo


def _pad_rows(patches, multiple):
    p = patches.shape[0]
    p_pad = _round_up(p, multiple)
    if p_pad != p:
        patches = jnp.pad(patches, ((0, p_pad - p), (0, 0)))  # zero rows: no BN impact
    return patches


def _disc_block(h_nhwc, w_kco, gamma, beta):
    n = h_nhwc.shape[0]
    patches, ho, wo = _extract_patches_nhwc(h_nhwc)
    p, k = patches.shape
    co = w_kco.shape[1]
    tile_p = _choose_tile_p(p, k, co)
    patches = _pad_rows(patches, tile_p)
    p_pad = patches.shape[0]

    # Whole-layer y scratch (lane-padded) must fit the VMEM budget to fuse.
    y_scratch_bytes = p_pad * _round_up(co, 128) * 4
    if y_scratch_bytes <= _FUSE_SCRATCH_BUDGET:
        out = _run_fused_block(patches, w_kco, gamma, beta, tile_p, p)[:p]
    else:
        # Fallback: stats-only pallas_call; BN + LeakyReLU in plain jnp so XLA
        # fuses it with the next layer's im2col glue.
        y, s, ss = _run_stats(patches, w_kco, tile_p)
        mean = s / p
        var = jnp.maximum(ss / p - mean * mean, 0.0)
        inv = jax.lax.rsqrt(var + EPS)
        scale = gamma * inv
        shift = beta - mean * scale
        z = y[:p].astype(jnp.float32) * scale + shift
        out = jnp.where(z >= 0, z, NEG_SLOPE * z).astype(jnp.bfloat16)

    return out.reshape(n, ho, wo, co)                   # stay NHWC, bf16


def _head(h_nhwc, w_k1):
    n = h_nhwc.shape[0]
    patches, ho, wo = _extract_patches_nhwc(h_nhwc)
    p, _ = patches.shape
    patches = _pad_rows(patches, 8)                     # P is just the batch size
    out = _run_head(patches, w_k1)
    out = out[:p].reshape(n, ho, wo, 1)
    return jnp.transpose(out, (0, 3, 1, 2))             # back to NCHW for the caller


def _num_middle_layers(img_shape):
    power_of_two = 0
    divider = img_shape[0]
    while divider > 1:
        divider //= 2
        power_of_two += 1
    return power_of_two - 2


def _pack_conv_weight(w_torch_layout):
    """[Co, Cin, KH, KW] -> [KH*KW*Cin, Co] bf16, matching the (kh, kw, c) K order."""
    co, cin = w_torch_layout.shape[0], w_torch_layout.shape[1]
    return (jnp.transpose(w_torch_layout, (2, 3, 1, 0))
            .reshape(KH * KW * cin, co).astype(jnp.bfloat16))


def init_params(key, img_shape, latent_dim):
    """Deterministic synthetic parameters matching HandsDiscriminator.__init__ shapes,
    pre-packed once into the kernel-friendly [K, Co] layout."""
    chans = [3, latent_dim]
    c = latent_dim
    for _ in range(_num_middle_layers(img_shape)):
        c += latent_dim
        chans.append(c)

    blocks = []
    for i in range(len(chans) - 1):
        key, k1 = jax.random.split(key)
        w = 0.05 * jax.random.normal(k1, (chans[i + 1], chans[i], KH, KW), jnp.float32)
        blocks.append({
            "w": _pack_conv_weight(w),                          # [K, Co] bf16
            "gamma": jnp.ones((1, chans[i + 1]), jnp.float32),  # BatchNorm2d default weight
            "beta": jnp.zeros((1, chans[i + 1]), jnp.float32),  # BatchNorm2d default bias
        })

    key, k1 = jax.random.split(key)
    head_w = 0.05 * jax.random.normal(k1, (1, chans[-1], KH, KW), jnp.float32)
    return {"blocks": blocks, "head": _pack_conv_weight(head_w)}  # [K, 1] bf16


def hands_discriminator_forward(x_nchw, params):
    h = jnp.transpose(x_nchw, (0, 2, 3, 1))             # NCHW -> NHWC once
    for blk in params["blocks"]:
        h = _disc_block(h, blk["w"], blk["gamma"], blk["beta"])
    return _head(h, params["head"])                      # NCHW [N, 1, Ho, Wo]


if __name__ == "__main__":
    key = jax.random.PRNGKey(0)
    kx, kp = jax.random.split(key)

    img_shape = (16, 16)
    latent_dim = 4
    batch = 2

    x = jax.random.normal(kx, (batch, 3, img_shape[0], img_shape[1]), jnp.float32)
    params = init_params(kp, img_shape, latent_dim)

    fwd = jax.jit(hands_discriminator_forward)
    out = jax.block_until_ready(fwd(x, params))

    assert out.shape == (batch, 1, 1, 1), out.shape
    assert bool(jnp.all((out >= 0.0) & (out <= 1.0)))
    print("KERNEL_OK")
</pallas_src>

<mosaic_0001>
module attributes {stable_mosaic.version = 11 : i64} {
  func.func @_fused_block_kernel(%arg0: i32, %arg1: i32, %arg2: memref<128x48xbf16, #tpu.memory_space<vmem>>, %arg3: memref<48x4xbf16, #tpu.memory_space<vmem>>, %arg4: memref<1x4xf32, #tpu.memory_space<vmem>>, %arg5: memref<1x4xf32, #tpu.memory_space<vmem>>, %arg6: memref<128x4xbf16, #tpu.memory_space<vmem>>, %arg7: memref<128x4xf32, #tpu.memory_space<vmem>>, %arg8: memref<1x4xf32, #tpu.memory_space<vmem>>, %arg9: memref<1x4xf32, #tpu.memory_space<vmem>>, %arg10: memref<1x4xf32, #tpu.memory_space<vmem>>, %arg11: memref<1x4xf32, #tpu.memory_space<vmem>>) attributes {dimension_semantics = [#tpu.dimension_semantics<arbitrary>, #tpu.dimension_semantics<arbitrary>], iteration_bounds = array<i64: 2, 1>, scalar_prefetch = 0 : i64, scratch_operands = 5 : i64, tpu.core_type = #tpu.core_type<tc>, window_params = [{transform_indices = @transform_0, window_bounds = array<i64: 128, 48>}, {pipeline_mode = #tpu.pipeline_mode<synchronous>, transform_indices = @transform_1, window_bounds = array<i64: 48, 4>}, {pipeline_mode = #tpu.pipeline_mode<synchronous>, transform_indices = @transform_2, window_bounds = array<i64: 1, 4>}, {pipeline_mode = #tpu.pipeline_mode<synchronous>, transform_indices = @transform_3, window_bounds = array<i64: 1, 4>}, {transform_indices = @transform_4, window_bounds = array<i64: 128, 4>}]} {
    %c0_i32 = arith.constant 0 : i32
    %0 = arith.cmpi eq, %arg0, %c0_i32 : i32
    %c0_i32_0 = arith.constant 0 : i32
    %1 = arith.cmpi eq, %arg1, %c0_i32_0 : i32
    %2 = arith.andi %0, %1 : i1
    %3 = arith.extui %2 : i1 to i32
    %c0_i32_1 = arith.constant 0 : i32
    %4 = arith.cmpi ne, %3, %c0_i32_1 : i32
    scf.if %4 {
      %cst = arith.constant 0.000000e+00 : f32
      %16 = vector.broadcast %cst : f32 to vector<1x4xf32>
      %c0 = arith.constant 0 : index
      %c0_8 = arith.constant 0 : index
      %17 = vector.load %arg8[%c0, %c0_8] : memref<1x4xf32, #tpu.memory_space<vmem>>, vector<1x4xf32>
      tpu.vector_store %arg8[%c0, %c0_8], %16 {strides = array<i32>} : memref<1x4xf32, #tpu.memory_space<vmem>>, vector<1x4xf32>,
      %cst_9 = arith.constant 0.000000e+00 : f32
      %18 = vector.broadcast %cst_9 : f32 to vector<1x4xf32>
      %c0_10 = arith.constant 0 : index
      %c0_11 = arith.constant 0 : index
      %19 = vector.load %arg9[%c0_10, %c0_11] : memref<1x4xf32, #tpu.memory_space<vmem>>, vector<1x4xf32>
      tpu.vector_store %arg9[%c0_10, %c0_11], %18 {strides = array<i32>} : memref<1x4xf32, #tpu.memory_space<vmem>>, vector<1x4xf32>,
    } else {
    }
    %c0_i32_2 = arith.constant 0 : i32
    %5 = arith.cmpi eq, %arg0, %c0_i32_2 : i32
    %6 = arith.extui %5 : i1 to i32
    %c0_i32_3 = arith.constant 0 : i32
    %7 = arith.cmpi ne, %6, %c0_i32_3 : i32
    scf.if %7 {
      %c0 = arith.constant 0 : index
      %c0_8 = arith.constant 0 : index
      %16 = vector.load %arg2[%c0, %c0_8] : memref<128x48xbf16, #tpu.memory_space<vmem>>, vector<128x48xbf16>
      %c0_9 = arith.constant 0 : index
      %c0_10 = arith.constant 0 : index
      %17 = vector.load %arg3[%c0_9, %c0_10] : memref<48x4xbf16, #tpu.memory_space<vmem>>, vector<48x4xbf16>
      %cst = arith.constant dense<0.000000e+00> : vector<128x4xf32>
      %18 = tpu.matmul %16, %17, %cst {dimension_numbers = #tpu.dot_dimension_numbers<[1], [0], [0], [1], [0, 0, 1, 1], [], []>} : vector<128x48xbf16>, vector<48x4xbf16>, vector<128x4xf32> -> vector<128x4xf32>
      %c128_i32 = arith.constant 128 : i32
      %19 = arith.muli %arg1, %c128_i32 : i32
      %20 = tpu.assume_multiple %19, 128 : i32
      %21 = arith.index_cast %20 : i32 to index
      %c0_11 = arith.constant 0 : index
      %22 = vector.load %arg7[%21, %c0_11] : memref<128x4xf32, #tpu.memory_space<vmem>>, vector<128x4xf32>
      tpu.vector_store %arg7[%21, %c0_11], %18 {strides = array<i32>} : memref<128x4xf32, #tpu.memory_space<vmem>>, vector<128x4xf32>,
      %c0_12 = arith.constant 0 : index
      %c0_13 = arith.constant 0 : index
      %23 = vector.load %arg8[%c0_12, %c0_13] : memref<1x4xf32, #tpu.memory_space<vmem>>, vector<1x4xf32>
      %cst_14 = arith.constant dense<0.000000e+00> : vector<4xf32>
      %24 = vector.multi_reduction <add>, %18, %cst_14 [0] : vector<128x4xf32> to vector<4xf32>
      %25 = vector.shape_cast %24 : vector<4xf32> to vector<1x4xf32>
      %26 = arith.addf %23, %25 : vector<1x4xf32>
      %c0_15 = arith.constant 0 : index
      %c0_16 = arith.constant 0 : index
      %27 = vector.load %arg8[%c0_15, %c0_16] : memref<1x4xf32, #tpu.memory_space<vmem>>, vector<1x4xf32>
      tpu.vector_store %arg8[%c0_15, %c0_16], %26 {strides = array<i32>} : memref<1x4xf32, #tpu.memory_space<vmem>>, vector<1x4xf32>,
      %c0_17 = arith.constant 0 : index
      %c0_18 = arith.constant 0 : index
      %28 = vector.load %arg9[%c0_17, %c0_18] : memref<1x4xf32, #tpu.memory_space<vmem>>, vector<1x4xf32>
      %29 = arith.mulf %18, %18 : vector<128x4xf32>
      %cst_19 = arith.constant dense<0.000000e+00> : vector<4xf32>
      %30 = vector.multi_reduction <add>, %29, %cst_19 [0] : vector<128x4xf32> to vector<4xf32>
      %31 = vector.shape_cast %30 : vector<4xf32> to vector<1x4xf32>
      %32 = arith.addf %28, %31 : vector<1x4xf32>
      %c0_20 = arith.constant 0 : index
      %c0_21 = arith.constant 0 : index
      %33 = vector.load %arg9[%c0_20, %c0_21] : memref<1x4xf32, #tpu.memory_space<vmem>>, vector<1x4xf32>
      tpu.vector_store %arg9[%c0_20, %c0_21], %32 {strides = array<i32>} : memref<1x4xf32, #tpu.memory_space<vmem>>, vector<1x4xf32>,
    } else {
    }
    %c1_i32 = arith.constant 1 : i32
    %8 = arith.cmpi eq, %arg0, %c1_i32 : i32
    %c0_i32_4 = arith.constant 0 : i32
    %9 = arith.cmpi eq, %arg1, %c0_i32_4 : i32
    %10 = arith.andi %8, %9 : i1
    %11 = arith.extui %10 : i1 to i32
    %c0_i32_5 = arith.constant 0 : i32
    %12 = arith.cmpi ne, %11, %c0_i32_5 : i32
    scf.if %12 {
      %c0 = arith.constant 0 : index
      %c0_8 = arith.constant 0 : index
      %16 = vector.load %arg8[%c0, %c0_8] : memref<1x4xf32, #tpu.memory_space<vmem>>, vector<1x4xf32>
      %cst = arith.constant 7.812500e-03 : f32
      %17 = vector.broadcast %cst : f32 to vector<1x4xf32>
      %18 = arith.mulf %16, %17 : vector<1x4xf32>
      %c0_9 = arith.constant 0 : index
      %c0_10 = arith.constant 0 : index
      %19 = vector.load %arg9[%c0_9, %c0_10] : memref<1x4xf32, #tpu.memory_space<vmem>>, vector<1x4xf32>
      %cst_11 = arith.constant 7.812500e-03 : f32
      %20 = vector.broadcast %cst_11 : f32 to vector<1x4xf32>
      %21 = arith.mulf %19, %20 : vector<1x4xf32>
      %22 = arith.mulf %18, %18 : vector<1x4xf32>
      %23 = arith.subf %21, %22 : vector<1x4xf32>
      %cst_12 = arith.constant 0.000000e+00 : f32
      %24 = vector.broadcast %cst_12 : f32 to vector<1x4xf32>
      %25 = arith.maximumf %23, %24 : vector<1x4xf32>
      %cst_13 = arith.constant 9.99999974E-6 : f32
      %26 = vector.broadcast %cst_13 : f32 to vector<1x4xf32>
      %27 = arith.addf %25, %26 : vector<1x4xf32>
      %28 = math.rsqrt %27 : vector<1x4xf32>
      %c0_14 = arith.constant 0 : index
      %c0_15 = arith.constant 0 : index
      %29 = vector.load %arg4[%c0_14, %c0_15] : memref<1x4xf32, #tpu.memory_space<vmem>>, vector<1x4xf32>
      %30 = arith.mulf %29, %28 : vector<1x4xf32>
      %c0_16 = arith.constant 0 : index
      %c0_17 = arith.constant 0 : index
      %31 = vector.load %arg10[%c0_16, %c0_17] : memref<1x4xf32, #tpu.memory_space<vmem>>, vector<1x4xf32>
      tpu.vector_store %arg10[%c0_16, %c0_17], %30 {strides = array<i32>} : memref<1x4xf32, #tpu.memory_space<vmem>>, vector<1x4xf32>,
      %c0_18 = arith.constant 0 : index
      %c0_19 = arith.constant 0 : index
      %32 = vector.load %arg5[%c0_18, %c0_19] : memref<1x4xf32, #tpu.memory_space<vmem>>, vector<1x4xf32>
      %33 = arith.mulf %18, %30 : vector<1x4xf32>
      %34 = arith.subf %32, %33 : vector<1x4xf32>
      %c0_20 = arith.constant 0 : index
      %c0_21 = arith.constant 0 : index
      %35 = vector.load %arg11[%c0_20, %c0_21] : memref<1x4xf32, #tpu.memory_space<vmem>>, vector<1x4xf32>
      tpu.vector_store %arg11[%c0_20, %c0_21], %34 {strides = array<i32>} : memref<1x4xf32, #tpu.memory_space<vmem>>, vector<1x4xf32>,
    } else {
    }
    %c1_i32_6 = arith.constant 1 : i32
    %13 = arith.cmpi eq, %arg0, %c1_i32_6 : i32
    %14 = arith.extui %13 : i1 to i32
    %c0_i32_7 = arith.constant 0 : i32
    %15 = arith.cmpi ne, %14, %c0_i32_7 : i32
    scf.if %15 {
      %c128_i32 = arith.constant 128 : i32
      %16 = arith.muli %arg1, %c128_i32 : i32
      %17 = tpu.assume_multiple %16, 128 : i32
      %18 = arith.index_cast %17 : i32 to index
      %c0 = arith.constant 0 : index
      %19 = vector.load %arg7[%18, %c0] : memref<128x4xf32, #tpu.memory_space<vmem>>, vector<128x4xf32>
      %c0_8 = arith.constant 0 : index
      %c0_9 = arith.constant 0 : index
      %20 = vector.load %arg10[%c0_8, %c0_9] : memref<1x4xf32, #tpu.memory_space<vmem>>, vector<1x4xf32>
      %21 = vector.broadcast %20 : vector<1x4xf32> to vector<128x4xf32>
      %22 = arith.mulf %19, %21 : vector<128x4xf32>
      %c0_10 = arith.constant 0 : index
      %c0_11 = arith.constant 0 : index
      %23 = vector.load %arg11[%c0_10, %c0_11] : memref<1x4xf32, #tpu.memory_space<vmem>>, vector<1x4xf32>
      %24 = vector.broadcast %23 : vector<1x4xf32> to vector<128x4xf32>
      %25 = arith.addf %22, %24 : vector<128x4xf32>
      %cst = arith.constant 0.000000e+00 : f32
      %26 = vector.broadcast %cst : f32 to vector<128x4xf32>
      %27 = arith.cmpf oge, %25, %26 : vector<128x4xf32>
      %cst_12 = arith.constant 2.000000e-01 : f32
      %28 = vector.broadcast %cst_12 : f32 to vector<128x4xf32>
      %29 = arith.mulf %28, %25 : vector<128x4xf32>
      %30 = arith.select %27, %25, %29 : vector<128x4xi1>, vector<128x4xf32>
      %31 = arith.truncf %30 : vector<128x4xf32> to vector<128x4xbf16>
      %c0_13 = arith.constant 0 : index
      %c0_14 = arith.constant 0 : index
      %32 = vector.load %arg6[%c0_13, %c0_14] : memref<128x4xbf16, #tpu.memory_space<vmem>>, vector<128x4xbf16>
      tpu.vector_store %arg6[%c0_13, %c0_14], %31 {strides = array<i32>} : memref<128x4xbf16, #tpu.memory_space<vmem>>, vector<128x4xbf16>,
    } else {
    }
    return
  }
  func.func @transform_0(%arg0: i32, %arg1: i32) -> (i32, i32) {
    %c1_i32 = arith.constant 1 : i32
    %0 = arith.subi %c1_i32, %arg0 : i32
    %1 = arith.muli %arg1, %0 : i32
    %c0_i32 = arith.constant 0 : i32
    %c0_i32_0 = arith.constant 0 : i32
    return %1, %c0_i32 : i32, i32
  }
  func.func @transform_1(%arg0: i32, %arg1: i32) -> (i32, i32) {
    %c0_i32 = arith.constant 0 : i32
    %c0_i32_0 = arith.constant 0 : i32
    %c0_i32_1 = arith.constant 0 : i32
    return %c0_i32, %c0_i32_0 : i32, i32
  }
  func.func @transform_2(%arg0: i32, %arg1: i32) -> (i32, i32) {
    %c0_i32 = arith.constant 0 : i32
    %c0_i32_0 = arith.constant 0 : i32
    %c0_i32_1 = arith.constant 0 : i32
    return %c0_i32, %c0_i32_0 : i32, i32
  }
  func.func @transform_3(%arg0: i32, %arg1: i32) -> (i32, i32) {
    %c0_i32 = arith.constant 0 : i32
    %c0_i32_0 = arith.constant 0 : i32
    %c0_i32_1 = arith.constant 0 : i32
    return %c0_i32, %c0_i32_0 : i32, i32
  }
  func.func @transform_4(%arg0: i32, %arg1: i32) -> (i32, i32) {
    %0 = arith.muli %arg1, %arg0 : i32
    %c0_i32 = arith.constant 0 : i32
    %c0_i32_0 = arith.constant 0 : i32
    return %0, %c0_i32 : i32, i32
  }
}

module attributes {stable_mosaic.version = 11 : i64} {
  func.func @_fused_block_kernel(%arg0: i32, %arg1: i32, %arg2: memref<32x64xbf16, #tpu.memory_space<vmem>>, %arg3: memref<64x8xbf16, #tpu.memory_space<vmem>>, %arg4: memref<1x8xf32, #tpu.memory_space<vmem>>, %arg5: memref<1x8xf32, #tpu.memory_space<vmem>>, %arg6: memref<32x8xbf16, #tpu.memory_space<vmem>>, %arg7: memref<32x8xf32, #tpu.memory_space<vmem>>, %arg8: memref<1x8xf32, #tpu.memory_space<vmem>>, %arg9: memref<1x8xf32, #tpu.memory_space<vmem>>, %arg10: memref<1x8xf32, #tpu.memory_space<vmem>>, %arg11: memref<1x8xf32, #tpu.memory_space<vmem>>) attributes {dimension_semantics = [#tpu.dimension_semantics<arbitrary>, #tpu.dimension_semantics<arbitrary>], iteration_bounds = array<i64: 2, 1>, scalar_prefetch = 0 : i64, scratch_operands = 5 : i64, tpu.core_type = #tpu.core_type<tc>, window_params = [{transform_indices = @transform_0, window_bounds = array<i64: 32, 64>}, {pipeline_mode = #tpu.pipeline_mode<synchronous>, transform_indices = @transform_1, window_bounds = array<i64: 64, 8>}, {pipeline_mode = #tpu.pipeline_mode<synchronous>, transform_indices = @transform_2, window_bounds = array<i64: 1, 8>}, {pipeline_mode = #tpu.pipeline_mode<synchronous>, transform_indices = @transform_3, window_bounds = array<i64: 1, 8>}, {transform_indices = @transform_4, window_bounds = array<i64: 32, 8>}]} {
    %c0_i32 = arith.constant 0 : i32
    %0 = arith.cmpi eq, %arg0, %c0_i32 : i32
    %c0_i32_0 = arith.constant 0 : i32
    %1 = arith.cmpi eq, %arg1, %c0_i32_0 : i32
    %2 = arith.andi %0, %1 : i1
    %3 = arith.extui %2 : i1 to i32
    %c0_i32_1 = arith.constant 0 : i32
    %4 = arith.cmpi ne, %3, %c0_i32_1 : i32
    scf.if %4 {
      %cst = arith.constant 0.000000e+00 : f32
      %16 = vector.broadcast %cst : f32 to vector<1x8xf32>
      %c0 = arith.constant 0 : index
      %c0_8 = arith.constant 0 : index
      %17 = vector.load %arg8[%c0, %c0_8] : memref<1x8xf32, #tpu.memory_space<vmem>>, vector<1x8xf32>
      tpu.vector_store %arg8[%c0, %c0_8], %16 {strides = array<i32>} : memref<1x8xf32, #tpu.memory_space<vmem>>, vector<1x8xf32>,
      %cst_9 = arith.constant 0.000000e+00 : f32
      %18 = vector.broadcast %cst_9 : f32 to vector<1x8xf32>
      %c0_10 = arith.constant 0 : index
      %c0_11 = arith.constant 0 : index
      %19 = vector.load %arg9[%c0_10, %c0_11] : memref<1x8xf32, #tpu.memory_space<vmem>>, vector<1x8xf32>
      tpu.vector_store %arg9[%c0_10, %c0_11], %18 {strides = array<i32>} : memref<1x8xf32, #tpu.memory_space<vmem>>, vector<1x8xf32>,
    } else {
    }
    %c0_i32_2 = arith.constant 0 : i32
    %5 = arith.cmpi eq, %arg0, %c0_i32_2 : i32
    %6 = arith.extui %5 : i1 to i32
    %c0_i32_3 = arith.constant 0 : i32
    %7 = arith.cmpi ne, %6, %c0_i32_3 : i32
    scf.if %7 {
      %c0 = arith.constant 0 : index
      %c0_8 = arith.constant 0 : index
      %16 = vector.load %arg2[%c0, %c0_8] : memref<32x64xbf16, #tpu.memory_space<vmem>>, vector<32x64xbf16>
      %c0_9 = arith.constant 0 : index
      %c0_10 = arith.constant 0 : index
      %17 = vector.load %arg3[%c0_9, %c0_10] : memref<64x8xbf16, #tpu.memory_space<vmem>>, vector<64x8xbf16>
      %cst = arith.constant dense<0.000000e+00> : vector<32x8xf32>
      %18 = tpu.matmul %16, %17, %cst {dimension_numbers = #tpu.dot_dimension_numbers<[1], [0], [0], [1], [0, 0, 1, 1], [], []>} : vector<32x64xbf16>, vector<64x8xbf16>, vector<32x8xf32> -> vector<32x8xf32>
      %c32_i32 = arith.constant 32 : i32
      %19 = arith.muli %arg1, %c32_i32 : i32
      %20 = tpu.assume_multiple %19, 32 : i32
      %21 = arith.index_cast %20 : i32 to index
      %c0_11 = arith.constant 0 : index
      %22 = vector.load %arg7[%21, %c0_11] : memref<32x8xf32, #tpu.memory_space<vmem>>, vector<32x8xf32>
      tpu.vector_store %arg7[%21, %c0_11], %18 {strides = array<i32>} : memref<32x8xf32, #tpu.memory_space<vmem>>, vector<32x8xf32>,
      %c0_12 = arith.constant 0 : index
      %c0_13 = arith.constant 0 : index
      %23 = vector.load %arg8[%c0_12, %c0_13] : memref<1x8xf32, #tpu.memory_space<vmem>>, vector<1x8xf32>
      %cst_14 = arith.constant dense<0.000000e+00> : vector<8xf32>
      %24 = vector.multi_reduction <add>, %18, %cst_14 [0] : vector<32x8xf32> to vector<8xf32>
      %25 = vector.shape_cast %24 : vector<8xf32> to vector<1x8xf32>
      %26 = arith.addf %23, %25 : vector<1x8xf32>
      %c0_15 = arith.constant 0 : index
      %c0_16 = arith.constant 0 : index
      %27 = vector.load %arg8[%c0_15, %c0_16] : memref<1x8xf32, #tpu.memory_space<vmem>>, vector<1x8xf32>
      tpu.vector_store %arg8[%c0_15, %c0_16], %26 {strides = array<i32>} : memref<1x8xf32, #tpu.memory_space<vmem>>, vector<1x8xf32>,
      %c0_17 = arith.constant 0 : index
      %c0_18 = arith.constant 0 : index
      %28 = vector.load %arg9[%c0_17, %c0_18] : memref<1x8xf32, #tpu.memory_space<vmem>>, vector<1x8xf32>
      %29 = arith.mulf %18, %18 : vector<32x8xf32>
      %cst_19 = arith.constant dense<0.000000e+00> : vector<8xf32>
      %30 = vector.multi_reduction <add>, %29, %cst_19 [0] : vector<32x8xf32> to vector<8xf32>
      %31 = vector.shape_cast %30 : vector<8xf32> to vector<1x8xf32>
      %32 = arith.addf %28, %31 : vector<1x8xf32>
      %c0_20 = arith.constant 0 : index
      %c0_21 = arith.constant 0 : index
      %33 = vector.load %arg9[%c0_20, %c0_21] : memref<1x8xf32, #tpu.memory_space<vmem>>, vector<1x8xf32>
      tpu.vector_store %arg9[%c0_20, %c0_21], %32 {strides = array<i32>} : memref<1x8xf32, #tpu.memory_space<vmem>>, vector<1x8xf32>,
    } else {
    }
    %c1_i32 = arith.constant 1 : i32
    %8 = arith.cmpi eq, %arg0, %c1_i32 : i32
    %c0_i32_4 = arith.constant 0 : i32
    %9 = arith.cmpi eq, %arg1, %c0_i32_4 : i32
    %10 = arith.andi %8, %9 : i1
    %11 = arith.extui %10 : i1 to i32
    %c0_i32_5 = arith.constant 0 : i32
    %12 = arith.cmpi ne, %11, %c0_i32_5 : i32
    scf.if %12 {
      %c0 = arith.constant 0 : index
      %c0_8 = arith.constant 0 : index
      %16 = vector.load %arg8[%c0, %c0_8] : memref<1x8xf32, #tpu.memory_space<vmem>>, vector<1x8xf32>
      %cst = arith.constant 3.125000e-02 : f32
      %17 = vector.broadcast %cst : f32 to vector<1x8xf32>
      %18 = arith.mulf %16, %17 : vector<1x8xf32>
      %c0_9 = arith.constant 0 : index
      %c0_10 = arith.constant 0 : index
      %19 = vector.load %arg9[%c0_9, %c0_10] : memref<1x8xf32, #tpu.memory_space<vmem>>, vector<1x8xf32>
      %cst_11 = arith.constant 3.125000e-02 : f32
      %20 = vector.broadcast %cst_11 : f32 to vector<1x8xf32>
      %21 = arith.mulf %19, %20 : vector<1x8xf32>
      %22 = arith.mulf %18, %18 : vector<1x8xf32>
      %23 = arith.subf %21, %22 : vector<1x8xf32>
      %cst_12 = arith.constant 0.000000e+00 : f32
      %24 = vector.broadcast %cst_12 : f32 to vector<1x8xf32>
      %25 = arith.maximumf %23, %24 : vector<1x8xf32>
      %cst_13 = arith.constant 9.99999974E-6 : f32
      %26 = vector.broadcast %cst_13 : f32 to vector<1x8xf32>
      %27 = arith.addf %25, %26 : vector<1x8xf32>
      %28 = math.rsqrt %27 : vector<1x8xf32>
      %c0_14 = arith.constant 0 : index
      %c0_15 = arith.constant 0 : index
      %29 = vector.load %arg4[%c0_14, %c0_15] : memref<1x8xf32, #tpu.memory_space<vmem>>, vector<1x8xf32>
      %30 = arith.mulf %29, %28 : vector<1x8xf32>
      %c0_16 = arith.constant 0 : index
      %c0_17 = arith.constant 0 : index
      %31 = vector.load %arg10[%c0_16, %c0_17] : memref<1x8xf32, #tpu.memory_space<vmem>>, vector<1x8xf32>
      tpu.vector_store %arg10[%c0_16, %c0_17], %30 {strides = array<i32>} : memref<1x8xf32, #tpu.memory_space<vmem>>, vector<1x8xf32>,
      %c0_18 = arith.constant 0 : index
      %c0_19 = arith.constant 0 : index
      %32 = vector.load %arg5[%c0_18, %c0_19] : memref<1x8xf32, #tpu.memory_space<vmem>>, vector<1x8xf32>
      %33 = arith.mulf %18, %30 : vector<1x8xf32>
      %34 = arith.subf %32, %33 : vector<1x8xf32>
      %c0_20 = arith.constant 0 : index
      %c0_21 = arith.constant 0 : index
      %35 = vector.load %arg11[%c0_20, %c0_21] : memref<1x8xf32, #tpu.memory_space<vmem>>, vector<1x8xf32>
      tpu.vector_store %arg11[%c0_20, %c0_21], %34 {strides = array<i32>} : memref<1x8xf32, #tpu.memory_space<vmem>>, vector<1x8xf32>,
    } else {
    }
    %c1_i32_6 = arith.constant 1 : i32
    %13 = arith.cmpi eq, %arg0, %c1_i32_6 : i32
    %14 = arith.extui %13 : i1 to i32
    %c0_i32_7 = arith.constant 0 : i32
    %15 = arith.cmpi ne, %14, %c0_i32_7 : i32
    scf.if %15 {
      %c32_i32 = arith.constant 32 : i32
      %16 = arith.muli %arg1, %c32_i32 : i32
      %17 = tpu.assume_multiple %16, 32 : i32
      %18 = arith.index_cast %17 : i32 to index
      %c0 = arith.constant 0 : index
      %19 = vector.load %arg7[%18, %c0] : memref<32x8xf32, #tpu.memory_space<vmem>>, vector<32x8xf32>
      %c0_8 = arith.constant 0 : index
      %c0_9 = arith.constant 0 : index
      %20 = vector.load %arg10[%c0_8, %c0_9] : memref<1x8xf32, #tpu.memory_space<vmem>>, vector<1x8xf32>
      %21 = vector.broadcast %20 : vector<1x8xf32> to vector<32x8xf32>
      %22 = arith.mulf %19, %21 : vector<32x8xf32>
      %c0_10 = arith.constant 0 : index
      %c0_11 = arith.constant 0 : index
      %23 = vector.load %arg11[%c0_10, %c0_11] : memref<1x8xf32, #tpu.memory_space<vmem>>, vector<1x8xf32>
      %24 = vector.broadcast %23 : vector<1x8xf32> to vector<32x8xf32>
      %25 = arith.addf %22, %24 : vector<32x8xf32>
      %cst = arith.constant 0.000000e+00 : f32
      %26 = vector.broadcast %cst : f32 to vector<32x8xf32>
      %27 = arith.cmpf oge, %25, %26 : vector<32x8xf32>
      %cst_12 = arith.constant 2.000000e-01 : f32
      %28 = vector.broadcast %cst_12 : f32 to vector<32x8xf32>
      %29 = arith.mulf %28, %25 : vector<32x8xf32>
      %30 = arith.select %27, %25, %29 : vector<32x8xi1>, vector<32x8xf32>
      %31 = arith.truncf %30 : vector<32x8xf32> to vector<32x8xbf16>
      %c0_13 = arith.constant 0 : index
      %c0_14 = arith.constant 0 : index
      %32 = vector.load %arg6[%c0_13, %c0_14] : memref<32x8xbf16, #tpu.memory_space<vmem>>, vector<32x8xbf16>
      tpu.vector_store %arg6[%c0_13, %c0_14], %31 {strides = array<i32>} : memref<32x8xbf16, #tpu.memory_space<vmem>>, vector<32x8xbf16>,
    } else {
    }
    return
  }
  func.func @transform_0(%arg0: i32, %arg1: i32) -> (i32, i32) {
    %c1_i32 = arith.constant 1 : i32
    %0 = arith.subi %c1_i32, %arg0 : i32
    %1 = arith.muli %arg1, %0 : i32
    %c0_i32 = arith.constant 0 : i32
    %c0_i32_0 = arith.constant 0 : i32
    return %1, %c0_i32 : i32, i32
  }
  func.func @transform_1(%arg0: i32, %arg1: i32) -> (i32, i32) {
    %c0_i32 = arith.constant 0 : i32
    %c0_i32_0 = arith.constant 0 : i32
    %c0_i32_1 = arith.constant 0 : i32
    return %c0_i32, %c0_i32_0 : i32, i32
  }
  func.func @transform_2(%arg0: i32, %arg1: i32) -> (i32, i32) {
    %c0_i32 = arith.constant 0 : i32
    %c0_i32_0 = arith.constant 0 : i32
    %c0_i32_1 = arith.constant 0 : i32
    return %c0_i32, %c0_i32_0 : i32, i32
  }
  func.func @transform_3(%arg0: i32, %arg1: i32) -> (i32, i32) {
    %c0_i32 = arith.constant 0 : i32
    %c0_i32_0 = arith.constant 0 : i32
    %c0_i32_1 = arith.constant 0 : i32
    return %c0_i32, %c0_i32_0 : i32, i32
  }
  func.func @transform_4(%arg0: i32, %arg1: i32) -> (i32, i32) {
    %0 = arith.muli %arg1, %arg0 : i32
    %c0_i32 = arith.constant 0 : i32
    %c0_i32_0 = arith.constant 0 : i32
    return %0, %c0_i32 : i32, i32
  }
}

module attributes {stable_mosaic.version = 11 : i64} {
  func.func @_fused_block_kernel(%arg0: i32, %arg1: i32, %arg2: memref<16x128xbf16, #tpu.memory_space<vmem>>, %arg3: memref<128x12xbf16, #tpu.memory_space<vmem>>, %arg4: memref<1x12xf32, #tpu.memory_space<vmem>>, %arg5: memref<1x12xf32, #tpu.memory_space<vmem>>, %arg6: memref<16x12xbf16, #tpu.memory_space<vmem>>, %arg7: memref<16x12xf32, #tpu.memory_space<vmem>>, %arg8: memref<1x12xf32, #tpu.memory_space<vmem>>, %arg9: memref<1x12xf32, #tpu.memory_space<vmem>>, %arg10: memref<1x12xf32, #tpu.memory_space<vmem>>, %arg11: memref<1x12xf32, #tpu.memory_space<vmem>>) attributes {dimension_semantics = [#tpu.dimension_semantics<arbitrary>, #tpu.dimension_semantics<arbitrary>], iteration_bounds = array<i64: 2, 1>, scalar_prefetch = 0 : i64, scratch_operands = 5 : i64, tpu.core_type = #tpu.core_type<tc>, window_params = [{transform_indices = @transform_0, window_bounds = array<i64: 16, 128>}, {pipeline_mode = #tpu.pipeline_mode<synchronous>, transform_indices = @transform_1, window_bounds = array<i64: 128, 12>}, {pipeline_mode = #tpu.pipeline_mode<synchronous>, transform_indices = @transform_2, window_bounds = array<i64: 1, 12>}, {pipeline_mode = #tpu.pipeline_mode<synchronous>, transform_indices = @transform_3, window_bounds = array<i64: 1, 12>}, {transform_indices = @transform_4, window_bounds = array<i64: 16, 12>}]} {
    %c0_i32 = arith.constant 0 : i32
    %0 = arith.cmpi eq, %arg0, %c0_i32 : i32
    %c0_i32_0 = arith.constant 0 : i32
    %1 = arith.cmpi eq, %arg1, %c0_i32_0 : i32
    %2 = arith.andi %0, %1 : i1
    %3 = arith.extui %2 : i1 to i32
    %c0_i32_1 = arith.constant 0 : i32
    %4 = arith.cmpi ne, %3, %c0_i32_1 : i32
    scf.if %4 {
      %cst = arith.constant 0.000000e+00 : f32
      %16 = vector.broadcast %cst : f32 to vector<1x12xf32>
      %c0 = arith.constant 0 : index
      %c0_8 = arith.constant 0 : index
      %17 = vector.load %arg8[%c0, %c0_8] : memref<1x12xf32, #tpu.memory_space<vmem>>, vector<1x12xf32>
      tpu.vector_store %arg8[%c0, %c0_8], %16 {strides = array<i32>} : memref<1x12xf32, #tpu.memory_space<vmem>>, vector<1x12xf32>,
      %cst_9 = arith.constant 0.000000e+00 : f32
      %18 = vector.broadcast %cst_9 : f32 to vector<1x12xf32>
      %c0_10 = arith.constant 0 : index
      %c0_11 = arith.constant 0 : index
      %19 = vector.load %arg9[%c0_10, %c0_11] : memref<1x12xf32, #tpu.memory_space<vmem>>, vector<1x12xf32>
      tpu.vector_store %arg9[%c0_10, %c0_11], %18 {strides = array<i32>} : memref<1x12xf32, #tpu.memory_space<vmem>>, vector<1x12xf32>,
    } else {
    }
    %c0_i32_2 = arith.constant 0 : i32
    %5 = arith.cmpi eq, %arg0, %c0_i32_2 : i32
    %6 = arith.extui %5 : i1 to i32
    %c0_i32_3 = arith.constant 0 : i32
    %7 = arith.cmpi ne, %6, %c0_i32_3 : i32
    scf.if %7 {
      %c0 = arith.constant 0 : index
      %c0_8 = arith.constant 0 : index
      %16 = vector.load %arg2[%c0, %c0_8] : memref<16x128xbf16, #tpu.memory_space<vmem>>, vector<16x128xbf16>
      %c0_9 = arith.constant 0 : index
      %c0_10 = arith.constant 0 : index
      %17 = vector.load %arg3[%c0_9, %c0_10] : memref<128x12xbf16, #tpu.memory_space<vmem>>, vector<128x12xbf16>
      %cst = arith.constant dense<0.000000e+00> : vector<16x12xf32>
      %18 = tpu.matmul %16, %17, %cst {dimension_numbers = #tpu.dot_dimension_numbers<[1], [0], [0], [1], [0, 0, 1, 1], [], []>} : vector<16x128xbf16>, vector<128x12xbf16>, vector<16x12xf32> -> vector<16x12xf32>
      %c16_i32 = arith.constant 16 : i32
      %19 = arith.muli %arg1, %c16_i32 : i32
      %20 = tpu.assume_multiple %19, 16 : i32
      %21 = arith.index_cast %20 : i32 to index
      %c0_11 = arith.constant 0 : index
      %22 = vector.load %arg7[%21, %c0_11] : memref<16x12xf32, #tpu.memory_space<vmem>>, vector<16x12xf32>
      tpu.vector_store %arg7[%21, %c0_11], %18 {strides = array<i32>} : memref<16x12xf32, #tpu.memory_space<vmem>>, vector<16x12xf32>,
      %c0_12 = arith.constant 0 : index
      %c0_13 = arith.constant 0 : index
      %23 = vector.load %arg8[%c0_12, %c0_13] : memref<1x12xf32, #tpu.memory_space<vmem>>, vector<1x12xf32>
      %cst_14 = arith.constant dense<0.000000e+00> : vector<12xf32>
      %24 = vector.multi_reduction <add>, %18, %cst_14 [0] : vector<16x12xf32> to vector<12xf32>
      %25 = vector.shape_cast %24 : vector<12xf32> to vector<1x12xf32>
      %26 = arith.addf %23, %25 : vector<1x12xf32>
      %c0_15 = arith.constant 0 : index
      %c0_16 = arith.constant 0 : index
      %27 = vector.load %arg8[%c0_15, %c0_16] : memref<1x12xf32, #tpu.memory_space<vmem>>, vector<1x12xf32>
      tpu.vector_store %arg8[%c0_15, %c0_16], %26 {strides = array<i32>} : memref<1x12xf32, #tpu.memory_space<vmem>>, vector<1x12xf32>,
      %c0_17 = arith.constant 0 : index
      %c0_18 = arith.constant 0 : index
      %28 = vector.load %arg9[%c0_17, %c0_18] : memref<1x12xf32, #tpu.memory_space<vmem>>, vector<1x12xf32>
      %29 = arith.mulf %18, %18 : vector<16x12xf32>
      %cst_19 = arith.constant dense<0.000000e+00> : vector<12xf32>
      %30 = vector.multi_reduction <add>, %29, %cst_19 [0] : vector<16x12xf32> to vector<12xf32>
      %31 = vector.shape_cast %30 : vector<12xf32> to vector<1x12xf32>
      %32 = arith.addf %28, %31 : vector<1x12xf32>
      %c0_20 = arith.constant 0 : index
      %c0_21 = arith.constant 0 : index
      %33 = vector.load %arg9[%c0_20, %c0_21] : memref<1x12xf32, #tpu.memory_space<vmem>>, vector<1x12xf32>
      tpu.vector_store %arg9[%c0_20, %c0_21], %32 {strides = array<i32>} : memref<1x12xf32, #tpu.memory_space<vmem>>, vector<1x12xf32>,
    } else {
    }
    %c1_i32 = arith.constant 1 : i32
    %8 = arith.cmpi eq, %arg0, %c1_i32 : i32
    %c0_i32_4 = arith.constant 0 : i32
    %9 = arith.cmpi eq, %arg1, %c0_i32_4 : i32
    %10 = arith.andi %8, %9 : i1
    %11 = arith.extui %10 : i1 to i32
    %c0_i32_5 = arith.constant 0 : i32
    %12 = arith.cmpi ne, %11, %c0_i32_5 : i32
    scf.if %12 {
      %c0 = arith.constant 0 : index
      %c0_8 = arith.constant 0 : index
      %16 = vector.load %arg8[%c0, %c0_8] : memref<1x12xf32, #tpu.memory_space<vmem>>, vector<1x12xf32>
      %cst = arith.constant 1.250000e-01 : f32
      %17 = vector.broadcast %cst : f32 to vector<1x12xf32>
      %18 = arith.mulf %16, %17 : vector<1x12xf32>
      %c0_9 = arith.constant 0 : index
      %c0_10 = arith.constant 0 : index
      %19 = vector.load %arg9[%c0_9, %c0_10] : memref<1x12xf32, #tpu.memory_space<vmem>>, vector<1x12xf32>
      %cst_11 = arith.constant 1.250000e-01 : f32
      %20 = vector.broadcast %cst_11 : f32 to vector<1x12xf32>
      %21 = arith.mulf %19, %20 : vector<1x12xf32>
      %22 = arith.mulf %18, %18 : vector<1x12xf32>
      %23 = arith.subf %21, %22 : vector<1x12xf32>
      %cst_12 = arith.constant 0.000000e+00 : f32
      %24 = vector.broadcast %cst_12 : f32 to vector<1x12xf32>
      %25 = arith.maximumf %23, %24 : vector<1x12xf32>
      %cst_13 = arith.constant 9.99999974E-6 : f32
      %26 = vector.broadcast %cst_13 : f32 to vector<1x12xf32>
      %27 = arith.addf %25, %26 : vector<1x12xf32>
      %28 = math.rsqrt %27 : vector<1x12xf32>
      %c0_14 = arith.constant 0 : index
      %c0_15 = arith.constant 0 : index
      %29 = vector.load %arg4[%c0_14, %c0_15] : memref<1x12xf32, #tpu.memory_space<vmem>>, vector<1x12xf32>
      %30 = arith.mulf %29, %28 : vector<1x12xf32>
      %c0_16 = arith.constant 0 : index
      %c0_17 = arith.constant 0 : index
      %31 = vector.load %arg10[%c0_16, %c0_17] : memref<1x12xf32, #tpu.memory_space<vmem>>, vector<1x12xf32>
      tpu.vector_store %arg10[%c0_16, %c0_17], %30 {strides = array<i32>} : memref<1x12xf32, #tpu.memory_space<vmem>>, vector<1x12xf32>,
      %c0_18 = arith.constant 0 : index
      %c0_19 = arith.constant 0 : index
      %32 = vector.load %arg5[%c0_18, %c0_19] : memref<1x12xf32, #tpu.memory_space<vmem>>, vector<1x12xf32>
      %33 = arith.mulf %18, %30 : vector<1x12xf32>
      %34 = arith.subf %32, %33 : vector<1x12xf32>
      %c0_20 = arith.constant 0 : index
      %c0_21 = arith.constant 0 : index
      %35 = vector.load %arg11[%c0_20, %c0_21] : memref<1x12xf32, #tpu.memory_space<vmem>>, vector<1x12xf32>
      tpu.vector_store %arg11[%c0_20, %c0_21], %34 {strides = array<i32>} : memref<1x12xf32, #tpu.memory_space<vmem>>, vector<1x12xf32>,
    } else {
    }
    %c1_i32_6 = arith.constant 1 : i32
    %13 = arith.cmpi eq, %arg0, %c1_i32_6 : i32
    %14 = arith.extui %13 : i1 to i32
    %c0_i32_7 = arith.constant 0 : i32
    %15 = arith.cmpi ne, %14, %c0_i32_7 : i32
    scf.if %15 {
      %c16_i32 = arith.constant 16 : i32
      %16 = arith.muli %arg1, %c16_i32 : i32
      %17 = tpu.assume_multiple %16, 16 : i32
      %18 = arith.index_cast %17 : i32 to index
      %c0 = arith.constant 0 : index
      %19 = vector.load %arg7[%18, %c0] : memref<16x12xf32, #tpu.memory_space<vmem>>, vector<16x12xf32>
      %c0_8 = arith.constant 0 : index
      %c0_9 = arith.constant 0 : index
      %20 = vector.load %arg10[%c0_8, %c0_9] : memref<1x12xf32, #tpu.memory_space<vmem>>, vector<1x12xf32>
      %21 = vector.broadcast %20 : vector<1x12xf32> to vector<16x12xf32>
      %22 = arith.mulf %19, %21 : vector<16x12xf32>
      %c0_10 = arith.constant 0 : index
      %c0_11 = arith.constant 0 : index
      %23 = vector.load %arg11[%c0_10, %c0_11] : memref<1x12xf32, #tpu.memory_space<vmem>>, vector<1x12xf32>
      %24 = vector.broadcast %23 : vector<1x12xf32> to vector<16x12xf32>
      %25 = arith.addf %22, %24 : vector<16x12xf32>
      %cst = arith.constant 0.000000e+00 : f32
      %26 = vector.broadcast %cst : f32 to vector<16x12xf32>
      %27 = arith.cmpf oge, %25, %26 : vector<16x12xf32>
      %cst_12 = arith.constant 2.000000e-01 : f32
      %28 = vector.broadcast %cst_12 : f32 to vector<16x12xf32>
      %29 = arith.mulf %28, %25 : vector<16x12xf32>
      %30 = arith.select %27, %25, %29 : vector<16x12xi1>, vector<16x12xf32>
      %31 = arith.truncf %30 : vector<16x12xf32> to vector<16x12xbf16>
      %c0_13 = arith.constant 0 : index
      %c0_14 = arith.constant 0 : index
      %32 = vector.load %arg6[%c0_13, %c0_14] : memref<16x12xbf16, #tpu.memory_space<vmem>>, vector<16x12xbf16>
      tpu.vector_store %arg6[%c0_13, %c0_14], %31 {strides = array<i32>} : memref<16x12xbf16, #tpu.memory_space<vmem>>, vector<16x12xbf16>,
    } else {
    }
    return
  }
  func.func @transform_0(%arg0: i32, %arg1: i32) -> (i32, i32) {
    %c1_i32 = arith.constant 1 : i32
    %0 = arith.subi %c1_i32, %arg0 : i32
    %1 = arith.muli %arg1, %0 : i32
    %c0_i32 = arith.constant 0 : i32
    %c0_i32_0 = arith.constant 0 : i32
    return %1, %c0_i32 : i32, i32
  }
  func.func @transform_1(%arg0: i32, %arg1: i32) -> (i32, i32) {
    %c0_i32 = arith.constant 0 : i32
    %c0_i32_0 = arith.constant 0 : i32
    %c0_i32_1 = arith.constant 0 : i32
    return %c0_i32, %c0_i32_0 : i32, i32
  }
  func.func @transform_2(%arg0: i32, %arg1: i32) -> (i32, i32) {
    %c0_i32 = arith.constant 0 : i32
    %c0_i32_0 = arith.constant 0 : i32
    %c0_i32_1 = arith.constant 0 : i32
    return %c0_i32, %c0_i32_0 : i32, i32
  }
  func.func @transform_3(%arg0: i32, %arg1: i32) -> (i32, i32) {
    %c0_i32 = arith.constant 0 : i32
    %c0_i32_0 = arith.constant 0 : i32
    %c0_i32_1 = arith.constant 0 : i32
    return %c0_i32, %c0_i32_0 : i32, i32
  }
  func.func @transform_4(%arg0: i32, %arg1: i32) -> (i32, i32) {
    %0 = arith.muli %arg1, %arg0 : i32
    %c0_i32 = arith.constant 0 : i32
    %c0_i32_0 = arith.constant 0 : i32
    return %0, %c0_i32 : i32, i32
  }
}

module attributes {stable_mosaic.version = 11 : i64} {
  func.func @_head_kernel(%arg0: i32, %arg1: memref<8x192xbf16, #tpu.memory_space<vmem>>, %arg2: memref<192x1xbf16, #tpu.memory_space<vmem>>, %arg3: memref<8x1xf32, #tpu.memory_space<vmem>>) attributes {dimension_semantics = [#tpu.dimension_semantics<arbitrary>], iteration_bounds = array<i64: 1>, scalar_prefetch = 0 : i64, scratch_operands = 0 : i64, tpu.core_type = #tpu.core_type<tc>, window_params = [{pipeline_mode = #tpu.pipeline_mode<synchronous>, transform_indices = @transform_0, window_bounds = array<i64: 8, 192>}, {pipeline_mode = #tpu.pipeline_mode<synchronous>, transform_indices = @transform_1, window_bounds = array<i64: 192, 1>}, {pipeline_mode = #tpu.pipeline_mode<synchronous>, transform_indices = @transform_2, window_bounds = array<i64: 8, 1>}]} {
    %c0 = arith.constant 0 : index
    %c0_0 = arith.constant 0 : index
    %0 = vector.load %arg1[%c0, %c0_0] : memref<8x192xbf16, #tpu.memory_space<vmem>>, vector<8x192xbf16>
    %c0_1 = arith.constant 0 : index
    %c0_2 = arith.constant 0 : index
    %1 = vector.load %arg2[%c0_1, %c0_2] : memref<192x1xbf16, #tpu.memory_space<vmem>>, vector<192x1xbf16>
    %cst = arith.constant dense<0.000000e+00> : vector<8x1xf32>
    %2 = tpu.matmul %0, %1, %cst {dimension_numbers = #tpu.dot_dimension_numbers<[1], [0], [0], [1], [0, 0, 1, 1], [], []>} : vector<8x192xbf16>, vector<192x1xbf16>, vector<8x1xf32> -> vector<8x1xf32>
    %3 = arith.negf %2 : vector<8x1xf32>
    %4 = math.exp %3 : vector<8x1xf32>
    %cst_3 = arith.constant 1.000000e+00 : f32
    %5 = vector.broadcast %cst_3 : f32 to vector<8x1xf32>
    %6 = arith.addf %5, %4 : vector<8x1xf32>
    %7 = arith.divf %5, %6 : vector<8x1xf32>
    %c0_4 = arith.constant 0 : index
    %c0_5 = arith.constant 0 : index
    %8 = vector.load %arg3[%c0_4, %c0_5] : memref<8x1xf32, #tpu.memory_space<vmem>>, vector<8x1xf32>
    tpu.vector_store %arg3[%c0_4, %c0_5], %7 {strides = array<i32>} : memref<8x1xf32, #tpu.memory_space<vmem>>, vector<8x1xf32>,
    return
  }
  func.func @transform_0(%arg0: i32) -> (i32, i32) {
    %c0_i32 = arith.constant 0 : i32
    %c0_i32_0 = arith.constant 0 : i32
    %c0_i32_1 = arith.constant 0 : i32
    return %c0_i32, %c0_i32_0 : i32, i32
  }
  func.func @transform_1(%arg0: i32) -> (i32, i32) {
    %c0_i32 = arith.constant 0 : i32
    %c0_i32_0 = arith.constant 0 : i32
    %c0_i32_1 = arith.constant 0 : i32
    return %c0_i32, %c0_i32_0 : i32, i32
  }
  func.func @transform_2(%arg0: i32) -> (i32, i32) {
    %c0_i32 = arith.constant 0 : i32
    %c0_i32_0 = arith.constant 0 : i32
    %c0_i32_1 = arith.constant 0 : i32
    return %c0_i32, %c0_i32_0 : i32, i32
  }
}

</mosaic_0001>

<llo_original>
// kernel: hands_discriminator_forward.4
$region0: #{hands_discriminator_forward.4}
  #allocation0 [shape = 'u32[]', space=smem, size = 0x4, offset = 0x4, fixed_abs, tag = 'smem constant byte address 0x4 - core index']
  #allocation1 [shape = 'u32[144,128]{1,0:T(1,128)}', space=vmem, size = 0x12000, scoped, tag = 'internal scratch']
  #allocation2 [shape = 'f32[128,4]{1,0:T(8,128)}', space=vmem, size = 0x10000, scoped, tag = 'scratch operand']
  #allocation3 [shape = 'f32[1,4]{1,0:T(1,128)}', space=vmem, size = 0x200, scoped, tag = 'scratch operand']
  #allocation4 [shape = 'f32[1,4]{1,0:T(1,128)}', space=vmem, size = 0x200, scoped, tag = 'scratch operand']
  #allocation5 [shape = 'f32[1,4]{1,0:T(1,128)}', space=vmem, size = 0x200, scoped, tag = 'scratch operand']
  #allocation6 [shape = 'f32[1,4]{1,0:T(1,128)}', space=vmem, size = 0x200, scoped, tag = 'scratch operand']
  %s0 = inlined_call_operand.vmem [shape: bf16[128,48], index: 0, kind: input, shape index: {}]
  %s1 = inlined_call_operand.vmem [shape: bf16[48,4], index: 1, kind: input, shape index: {}]
  %s2 = inlined_call_operand.vmem [shape: f32[1,4], index: 2, kind: input, shape index: {}]
  %s3 = inlined_call_operand.vmem [shape: f32[1,4], index: 3, kind: input, shape index: {}]
  %s4 = inlined_call_operand.vmem [shape: bf16[128,4], index: 4, kind: output, shape index: {}]
  %s5 = sld [smem:[#allocation0]]
  $region65: #{hands_discriminator_forward.4} parent=0
    _
  %s7 = ssub.s32 1, %s5
  %s8 = scalar_select 0, %s7, %s5
  loop: start=0, step=1, limit=4
  $region2: #{hands_discriminator_forward.4} parent=0 // loop_pre_header
    _
  $region3: #{hands_discriminator_forward.4} parent=0 // loop_header
    %s10 = sphi 0, %s14
    %p11 = scmp.ge.s32.totalorder %s10, 4
    %s17 = sphi 0, %s29
    %s18 = sphi 0, %s25
    %s19 = sphi 0, %s17
    %s20 = sphi 0, %s18
    %s21 = sphi 0, %s19
    %s22 = sphi 0, %s20
    %s36 = sphi 0, %s38
    %s39 = sphi 0, %s36
    %s40 = sphi 0, %s39
    %s56 = sphi 0, %s40
    %s60 = sphi 0, %s60
    %s62 = sphi 0, %s60
    %s63 = sphi 0, %s62
    %s77 = sphi 0, %s63
    %s81 = sphi 0, %s81
    %s83 = sphi 0, %s81
    %s84 = sphi 0, %s83
    %s98 = sphi 0, %s84
    %s102 = sphi 0, %s102
    %s104 = sphi 0, %s102
    %s105 = sphi 0, %s104
    %s119 = sphi 0, %s105
    %s127 = sphi 0, %s129
    %s130 = sphi 0, %s127
    %s131 = sphi 0, %s130
    %s147 = sphi 0, %s131
  $region4: #{hands_discriminator_forward.4} parent=0 // loop_header_branch
    %13 = sbr.rel (%p11) target = $region8
  $region5: #{hands_discriminator_forward.4} parent=0 // loop_body
    %s15 = ssub.s32 %s10, 1
    %s16 = ssub.s32 %s10, 2
    %s23 = sadd.s32 1, %s18
    %p24 = scmp.ge.s32.totalorder %s23, 1
    %s25 = scalar_select %p24, 0, %s23
    %s26 = sadd.s32 1, %s17
    %s27 = scalar_select %p24, %s26, %s17
    %p28 = scmp.ge.s32.totalorder %s27, 2
    %s29 = scalar_select %p28, 0, %s27
    %s30 = ssub.s32 1, %s17
    %s31 = smul.u32 %s18, %s30
    %s32 = ssub.s32 1, %s29
    %s33 = smul.u32 %s25, %s32
    %s34 = ssub.s32 %s31, %s33
    %p35 = scmp.eq.s32.totalorder %s34, 0
    %s37 = sadd.s32 %s36, 1
    %s38 = scalar_select %p35, %s36, %s37
    %p41 = pneg %p35
    %p42 = scmp.eq.s32.totalorder %s10, 1
    %p43 = por %p41, %p42
    %p44 = scmp.ne.s32.totalorder %s36, %s39
    %p45 = scmp.eq.s32.totalorder %s10, 0
    %p46 = por %p44, %p45
    %p47 = scmp.ne.s32.totalorder %s36, %s39
    %p48 = scmp.eq.s32.totalorder %s15, 1
    %p49 = por %p47, %p48
    %p50 = scmp.ne.s32.totalorder %s39, %s40
    %p51 = scmp.eq.s32.totalorder %s15, 0
    %p52 = por %p50, %p51
    %p53 = scmp.ne.s32.totalorder %s39, %s40
    %p54 = scmp.eq.s32.totalorder %s16, 1
    %p55 = por %p53, %p54
    %p57 = scmp.ne.s32.totalorder %s40, %s56
    %p58 = scmp.eq.s32.totalorder %s16, 0
    %p59 = por %p57, %p58
    %s61 = sadd.s32 %s60, 1
    %p64 = scmp.eq.s32.totalorder %s10, 1
    %p65 = scmp.ne.s32.totalorder %s60, %s62
    %p66 = scmp.eq.s32.totalorder %s10, 0
    %p67 = por %p65, %p66
    %p68 = scmp.ne.s32.totalorder %s60, %s62
    %p69 = scmp.eq.s32.totalorder %s15, 1
    %p70 = por %p68, %p69
    %p71 = scmp.ne.s32.totalorder %s62, %s63
    %p72 = scmp.eq.s32.totalorder %s15, 0
    %p73 = por %p71, %p72
    %p74 = scmp.ne.s32.totalorder %s62, %s63
    %p75 = scmp.eq.s32.totalorder %s16, 1
    %p76 = por %p74, %p75
    %p78 = scmp.ne.s32.totalorder %s63, %s77
    %p79 = scmp.eq.s32.totalorder %s16, 0
    %p80 = por %p78, %p79
    %s82 = sadd.s32 %s81, 1
    %p85 = scmp.eq.s32.totalorder %s10, 1
    %p86 = scmp.ne.s32.totalorder %s81, %s83
    %p87 = scmp.eq.s32.totalorder %s10, 0
    %p88 = por %p86, %p87
    %p89 = scmp.ne.s32.totalorder %s81, %s83
    %p90 = scmp.eq.s32.totalorder %s15, 1
    %p91 = por %p89, %p90
    %p92 = scmp.ne.s32.totalorder %s83, %s84
    %p93 = scmp.eq.s32.totalorder %s15, 0
    %p94 = por %p92, %p93
    %p95 = scmp.ne.s32.totalorder %s83, %s84
    %p96 = scmp.eq.s32.totalorder %s16, 1
    %p97 = por %p95, %p96
    %p99 = scmp.ne.s32.totalorder %s84, %s98
    %p100 = scmp.eq.s32.totalorder %s16, 0
    %p101 = por %p99, %p100
    %s103 = sadd.s32 %s102, 1
    %p106 = scmp.eq.s32.totalorder %s10, 1
    %p107 = scmp.ne.s32.totalorder %s102, %s104
    %p108 = scmp.eq.s32.totalorder %s10, 0
    %p109 = por %p107, %p108
    %p110 = scmp.ne.s32.totalorder %s102, %s104
    %p111 = scmp.eq.s32.totalorder %s15, 1
    %p112 = por %p110, %p111
    %p113 = scmp.ne.s32.totalorder %s104, %s105
    %p114 = scmp.eq.s32.totalorder %s15, 0
    %p115 = por %p113, %p114
    %p116 = scmp.ne.s32.totalorder %s104, %s105
    %p117 = scmp.eq.s32.totalorder %s16, 1
    %p118 = por %p116, %p117
    %p120 = scmp.ne.s32.totalorder %s105, %s119
    %p121 = scmp.eq.s32.totalorder %s16, 0
    %p122 = por %p120, %p121
    %s123 = smul.u32 %s18, %s17
    %s124 = smul.u32 %s25, %s29
    %s125 = ssub.s32 %s123, %s124
    %p126 = scmp.eq.s32.totalorder %s125, 0
    %s128 = sadd.s32 %s127, 1
    %s129 = scalar_select %p126, %s127, %s128
    %p132 = pneg %p126
    %p133 = scmp.eq.s32.totalorder %s10, 1
    %p134 = por %p132, %p133
    %p135 = scmp.ne.s32.totalorder %s127, %s130
    %p136 = scmp.eq.s32.totalorder %s10, 0
    %p137 = por %p135, %p136
    %p138 = scmp.ne.s32.totalorder %s127, %s130
    %p139 = scmp.eq.s32.totalorder %s15, 1
    %p140 = por %p138, %p139
    %p141 = scmp.ne.s32.totalorder %s130, %s131
    %p142 = scmp.eq.s32.totalorder %s15, 0
    %p143 = por %p141, %p142
    %p144 = scmp.ne.s32.totalorder %s130, %s131
    %p145 = scmp.eq.s32.totalorder %s16, 1
    %p146 = por %p144, %p145
    %p148 = scmp.ne.s32.totalorder %s131, %s147
    %p149 = scmp.eq.s32.totalorder %s16, 0
    %p150 = por %p148, %p149
    %p151 = scmp.le.s32.totalorder 1, %s10
    %p152 = scmp.lt.s32.totalorder %s10, 3
    %p153 = pnand %p151, %p152
    %p154 = pneg %p153
    // Predicated region
    $region9: #{hands_discriminator_forward.4} parent=5 // pred_check
      _
    $region10: #{hands_discriminator_forward.4} parent=5 // pred_check_branch
      %156 = sbr.rel (%p153) target = $region12
    $region11: #{hands_discriminator_forward.4} parent=5 // pred_region
      %s157 = ssub.s32 %s10, 1
      // Predicated region
      $region13: #{hands_discriminator_forward.4} parent=11 // pred_check
        %p158 = pneg %p73
      $region14: #{hands_discriminator_forward.4} parent=11 // pred_check_branch
        %160 = sbr.rel (%p158) target = $region16
      $region15: #{hands_discriminator_forward.4} parent=11 // pred_region
        _
      $region16: #{hands_discriminator_forward.4} parent=11 // pred_fallthru
        _
      // Predicated region
      $region17: #{hands_discriminator_forward.4} parent=11 // pred_check
        %p161 = pneg %p94
      $region18: #{hands_discriminator_forward.4} parent=11 // pred_check_branch
        %163 = sbr.rel (%p161) target = $region20
      $region19: #{hands_discriminator_forward.4} parent=11 // pred_region
        _
      $region20: #{hands_discriminator_forward.4} parent=11 // pred_fallthru
        _
      // Predicated region
      $region21: #{hands_discriminator_forward.4} parent=11 // pred_check
        %p164 = pneg %p115
      $region22: #{hands_discriminator_forward.4} parent=11 // pred_check_branch
        %166 = sbr.rel (%p164) target = $region24
      $region23: #{hands_discriminator_forward.4} parent=11 // pred_region
        _
      $region24: #{hands_discriminator_forward.4} parent=11 // pred_fallthru
        _
    $region12: #{hands_discriminator_forward.4} parent=5 // pred_fallthru
      _
    %p167 = scmp.lt.s32.totalorder %s10, 2
    // Predicated region
    $region25: #{hands_discriminator_forward.4} parent=5 // pred_check
      %p168 = pneg %p167
    $region26: #{hands_discriminator_forward.4} parent=5 // pred_check_branch
      %170 = sbr.rel (%p168) target = $region28
    $region27: #{hands_discriminator_forward.4} parent=5 // pred_region
      // Predicated region
      $region29: #{hands_discriminator_forward.4} parent=27 // pred_check
        %p171 = pneg %p46
      $region30: #{hands_discriminator_forward.4} parent=27 // pred_check_branch
        %173 = sbr.rel (%p171) target = $region32
      $region31: #{hands_discriminator_forward.4} parent=27 // pred_region
        %s174 = ssub.s32 1, %s17
        %s175 = smul.u32 %s18, %s174
        %s176 = smul.u32 16, %s175
        %p177 = scmp.lt.s32.totalorder %s176, 15
        %s178 = scalar_select %p177, %s176, 15
        %s179 = smul.addr %s178, 4
        %s180 = scalar_lea.vmem %s0, %s179
        %s181 = ssub.s32 1, %s17
        %s182 = smul.u32 %s18, %s181
        %s183 = smul.u32 16, %s182
      $region32: #{hands_discriminator_forward.4} parent=27 // pred_fallthru
        _
    $region28: #{hands_discriminator_forward.4} parent=5 // pred_fallthru
      _
    %p184 = scmp.le.s32.totalorder 1, %s10
    %p185 = scmp.lt.s32.totalorder %s10, 3
    %p186 = pnand %p184, %p185
    %p187 = pneg %p186
    // Predicated region
    $region33: #{hands_discriminator_forward.4} parent=5 // pred_check
      _
    $region34: #{hands_discriminator_forward.4} parent=5 // pred_check_branch
      %189 = sbr.rel (%p186) target = $region36
    $region35: #{hands_discriminator_forward.4} parent=5 // pred_region
      %s190 = ssub.s32 %s10, 1
      %s191 = ssub.s32 1, %s19
      %s192 = smul.u32 %s20, %s191
      %s193 = smul.u32 16, %s192
      %p194 = scmp.lt.s32.totalorder %s193, 15
      %s195 = scalar_select %p194, %s193, 15
      %s196 = smul.addr %s195, 4
      %s197 = scalar_lea.vmem %s0, %s196
      %p198 = pneg %p52
      %p199 = pneg %p49
      %p200 = pneg %p73
      %p201 = pneg %p70
      %p202 = pneg %p94
      %p203 = pneg %p91
      %p204 = pneg %p115
      %p205 = pneg %p112
      %p206 = pneg %p143
      %p207 = pneg %p140
      %s208 = smul.u32 %s20, %s19
      %s209 = smul.u32 16, %s208
      %p210 = scmp.lt.s32.totalorder %s209, 15
      %s211 = scalar_select %p210, %s209, 15
      %s212 = smul.addr %s211, 4
      %s213 = scalar_lea.vmem %s4, %s212
      %s214 = ssub.s32 1, %s19
      %s215 = smul.u32 %s20, %s214
      %s216 = smul.u32 16, %s215
      %p217 = scmp.lt.s32.totalorder %s216, 15
      %s218 = scalar_select %p217, %s216, 15
      %s219 = smul.addr %s218, 4
      %s220 = scalar_lea.vmem %s0, %s219
      %s221 = ssub.s32 1, %s19
      %s222 = smul.u32 %s20, %s221
      %s223 = smul.u32 16, %s222
      %s224 = smul.u32 %s20, %s19
      %s225 = smul.u32 16, %s224
      %p226 = scmp.lt.s32.totalorder %s225, 15
      %s227 = scalar_select %p226, %s225, 15
      %s228 = smul.addr %s227, 4
      %s229 = scalar_lea.vmem %s4, %s228
      %s230 = smul.u32 %s20, %s19
      %s231 = smul.u32 16, %s230
      %p233 = scmp.eq.s32.totalorder %s19, 0
      %p234 = scmp.eq.s32.totalorder %s20, 0
      %p235 = pnand %p233, %p234
      %p236 = pneg %p235
      // Predicated region
      $region37: #{hands_discriminator_forward.4} parent=35 // pred_check
        _
      $region38: #{hands_discriminator_forward.4} parent=35 // pred_check_branch
        %238 = sbr.rel (%p235) target = $region40
      $region39: #{hands_discriminator_forward.4} parent=35 // pred_region
        %vm239 = vcmask 24576
        %240 = vst.msk [vmem:[#allocation3] sm:$0x1] %vm239, 0.0
        %241 = vst.msk [vmem:[#allocation4] sm:$0x1] %vm239, 0.0
      $region40: #{hands_discriminator_forward.4} parent=35 // pred_fallthru
        _
      // Predicated region
      $region41: #{hands_discriminator_forward.4} parent=35 // pred_check
        %p242 = pneg %p233
      $region42: #{hands_discriminator_forward.4} parent=35 // pred_check_branch
        %244 = sbr.rel (%p242) target = $region44
      $region43: #{hands_discriminator_forward.4} parent=35 // pred_region
        %v245 = vld [vmem:[%s220] sm:$0xf]
        %v246 = vld [vmem:[%s220 + $0x4] sm:$0xf]
        %v247 = vld [vmem:[%s220 + $0x8] sm:$0xf]
        %v248 = vld [vmem:[%s220 + $0xc] sm:$0xf]
        %v249 = vld [vmem:[%s220 + $0x10] sm:$0xf]
        %v250 = vld [vmem:[%s220 + $0x14] sm:$0xf]
        %v251 = vld [vmem:[%s220 + $0x18] sm:$0xf]
        %v252 = vld [vmem:[%s220 + $0x1c] sm:$0xf]
        %v253 = vld [vmem:[%s220 + $0x20] sm:$0xf]
        %v254 = vld [vmem:[%s220 + $0x24] sm:$0xf]
        %v255 = vld [vmem:[%s220 + $0x28] sm:$0xf]
        %v256 = vld [vmem:[%s220 + $0x2c] sm:$0xf]
        %v257 = vld [vmem:[%s220 + $0x30] sm:$0xf]
        %v258 = vld [vmem:[%s220 + $0x34] sm:$0xf]
        %v259 = vld [vmem:[%s220 + $0x38] sm:$0xf]
        %v260 = vld [vmem:[%s220 + $0x3c] sm:$0xf]
        %v261 = vld [vmem:[%s1] sm:$0xf]
        %v262 = vld [vmem:[%s1 + $0x4] sm:$0xf]
        %v263 = vld [vmem:[%s1 + $0x8] sm:$0xf]
        %v264 = vld [vmem:[%s1 + $0xc] sm:$0xf]
        %v265 = vld [vmem:[%s1 + $0x10] sm:$0xf]
        %v266 = vld [vmem:[%s1 + $0x14] sm:$0xf]
        %v283 = vunpack.c.l.b16 %v245
        %v284 = vunpack.c.l.b16 %v246
        %v285 = vunpack.c.l.b16 %v247
        %v286 = vunpack.c.l.b16 %v248
        %v287 = vunpack.c.l.b16 %v249
        %v288 = vunpack.c.l.b16 %v250
        %v289 = vunpack.c.l.b16 %v251
        %v290 = vunpack.c.l.b16 %v252
        %v291 = vunpack.c.l.b16 %v253
        %v292 = vunpack.c.l.b16 %v254
        %v293 = vunpack.c.l.b16 %v255
        %v294 = vunpack.c.l.b16 %v256
        %v295 = vunpack.c.l.b16 %v257
        %v296 = vunpack.c.l.b16 %v258
        %v297 = vunpack.c.l.b16 %v259
        %v298 = vunpack.c.l.b16 %v260
        %v299 = vpack.c.b16 %v284, %v283
        %v300 = vpack.c.b16 %v286, %v285
        %v301 = vpack.c.b16 %v288, %v287
        %v302 = vpack.c.b16 %v290, %v289
        %v303 = vpack.c.b16 %v292, %v291
        %v304 = vpack.c.b16 %v294, %v293
        %v305 = vpack.c.b16 %v296, %v295
        %v306 = vpack.c.b16 %v298, %v297
        %v313 = vunpack.c.l.b16 %v261
        %v314 = vunpack.c.l.b16 %v262
        %v315 = vunpack.c.l.b16 %v263
        %v316 = vunpack.c.l.b16 %v264
        %v317 = vunpack.c.l.b16 %v265
        %v318 = vunpack.c.l.b16 %v266
        %v319 = vpack.c.b16 %v314, %v313
        %v320 = vpack.c.b16 %v316, %v315
        %v321 = vpack.c.b16 %v318, %v317
        %vm325 = vcmask 392192
        %v327 = vsel %vm325, %v299, 0
        %v330 = vsel %vm325, %v300, 0
        %v333 = vsel %vm325, %v301, 0
        %v336 = vsel %vm325, %v302, 0
        %v339 = vsel %vm325, %v303, 0
        %v342 = vsel %vm325, %v304, 0
        %v345 = vsel %vm325, %v305, 0
        %v348 = vsel %vm325, %v306, 0
        %350 = vmatprep.subr.bf16.mxu0 0
        %351 = vmatpush1.bf16.msra.mxu0 0
        %352 = vmatprep.subr.bf16.mxu0 0
        %353 = vmatpush1.bf16.msra.mxu0 0
        %354 = vmatprep.subr.bf16.mxu0 0
        %355 = vmatpush1.bf16.msra.mxu0 0
        %356 = vmatprep.subr.bf16.mxu0 0
        %357 = vmatpush1.bf16.msra.mxu0 0
        %358 = vmatprep.subr.bf16.mxu0 0
        %359 = vmatpush1.bf16.msra.mxu0 0
        %360 = vmatprep.subr.bf16.mxu0 0
        %361 = vmatpush1.bf16.msra.mxu0 %v321
        %362 = vmatprep.subr.bf16.mxu0 0
        %363 = vmatpush1.bf16.msra.mxu0 %v320
        %364 = vmatprep.subr.bf16.mxu0 0
        %365 = vmatpush1.bf16.msra.mxu0 %v319
        %366 = vmatprep.subr.bf16.mxu0 0
        %367 = vmatpush2.bf16.msra.mxu0 0
        %368 = vmatprep.subr.bf16.mxu0 0
        %369 = vmatpush2.bf16.msra.mxu0 0
        %370 = vmatprep.subr.bf16.mxu0 0
        %371 = vmatpush2.bf16.msra.mxu0 0
        %372 = vmatprep.subr.bf16.mxu0 0
        %373 = vmatpush2.bf16.msra.mxu0 0
        %374 = vmatprep.subr.bf16.mxu0 0
        %375 = vmatpush2.bf16.msra.mxu0 0
        %376 = vmatprep.subr.bf16.mxu0 0
        %377 = vmatpush2.bf16.msra.mxu0 0
        %378 = vmatprep.subr.bf16.mxu0 0
        %379 = vmatpush2.bf16.msra.mxu0 0
        %380 = vmatprep.subr.bf16.mxu0 0
        %381 = vmatpush2.bf16.msra.mxu0 0
        %382 = vmatprep.mubr.bf16.mxu0 0
        %383 = vmatmul.mubr.bf16.gmra.mxu0 %v327
        %v384 = vpop.f32.mrf.mxu0
        %v385 = vadd.f32 0.0, %v384
        %v386 = vpop.f32.mrf.mxu0
        %v387 = vpop.f32.mrf.mxu0
        %v388 = vadd.f32 0.0, %v387
        %v389 = vpop.f32.mrf.mxu0
        %390 = vmatprep.mubr.bf16.mxu0 0
        %391 = vmatmul.mubr.bf16.gmra.mxu0 %v330
        %v392 = vpop.f32.mrf.mxu0
        %v393 = vadd.f32 0.0, %v392
        %v394 = vpop.f32.mrf.mxu0
        %v395 = vpop.f32.mrf.mxu0
        %v396 = vadd.f32 0.0, %v395
        %v397 = vpop.f32.mrf.mxu0
        %398 = vmatprep.mubr.bf16.mxu0 0
        %399 = vmatmul.mubr.bf16.gmra.mxu0 %v333
        %v400 = vpop.f32.mrf.mxu0
        %v401 = vadd.f32 0.0, %v400
        %v402 = vpop.f32.mrf.mxu0
        %v403 = vpop.f32.mrf.mxu0
        %v404 = vadd.f32 0.0, %v403
        %v405 = vpop.f32.mrf.mxu0
        %406 = vmatprep.mubr.bf16.mxu0 0
        %407 = vmatmul.mubr.bf16.gmra.mxu0 %v336
        %v408 = vpop.f32.mrf.mxu0
        %v409 = vadd.f32 0.0, %v408
        %v410 = vpop.f32.mrf.mxu0
        %v411 = vpop.f32.mrf.mxu0
        %v412 = vadd.f32 0.0, %v411
        %v413 = vpop.f32.mrf.mxu0
        %414 = vmatprep.mubr.bf16.mxu0 0
        %415 = vmatmul.mubr.bf16.gmra.mxu0 %v339
        %v416 = vpop.f32.mrf.mxu0
        %v417 = vadd.f32 0.0, %v416
        %v418 = vpop.f32.mrf.mxu0
        %v419 = vpop.f32.mrf.mxu0
        %v420 = vadd.f32 0.0, %v419
        %v421 = vpop.f32.mrf.mxu0
        %422 = vmatprep.mubr.bf16.mxu0 0
        %423 = vmatmul.mubr.bf16.gmra.mxu0 %v342
        %v424 = vpop.f32.mrf.mxu0
        %v425 = vadd.f32 0.0, %v424
        %v426 = vpop.f32.mrf.mxu0
        %v427 = vpop.f32.mrf.mxu0
        %v428 = vadd.f32 0.0, %v427
        %v429 = vpop.f32.mrf.mxu0
        %430 = vmatprep.mubr.bf16.mxu0 0
        %431 = vmatmul.mubr.bf16.gmra.mxu0 %v345
        %v432 = vpop.f32.mrf.mxu0
        %v433 = vadd.f32 0.0, %v432
        %v434 = vpop.f32.mrf.mxu0
        %v435 = vpop.f32.mrf.mxu0
        %v436 = vadd.f32 0.0, %v435
        %v437 = vpop.f32.mrf.mxu0
        %438 = vmatprep.mubr.bf16.mxu0 0
        %439 = vmatmul.mubr.bf16.gmra.mxu0 %v348
        %v440 = vpop.f32.mrf.mxu0
        %v441 = vadd.f32 0.0, %v440
        %v442 = vpop.f32.mrf.mxu0
        %v443 = vpop.f32.mrf.mxu0
        %v444 = vadd.f32 0.0, %v443
        %v445 = vpop.f32.mrf.mxu0
        %446 = vdwg.mxu0
        %s447 = smul.u32 %s20, 128
        %s448 = scalar_lea.vmem [#allocation2], %s447
        %vm449 = vcmask 31744
        %450 = vst.msk [vmem:[%s448] sm:$0xff] %vm449, %v385
        %451 = vst.msk [vmem:[%s448 + $0x8] sm:$0xff] %vm449, %v388
        %452 = vst.msk [vmem:[%s448 + $0x10] sm:$0xff] %vm449, %v393
        %453 = vst.msk [vmem:[%s448 + $0x18] sm:$0xff] %vm449, %v396
        %454 = vst.msk [vmem:[%s448 + $0x20] sm:$0xff] %vm449, %v401
        %455 = vst.msk [vmem:[%s448 + $0x28] sm:$0xff] %vm449, %v404
        %456 = vst.msk [vmem:[%s448 + $0x30] sm:$0xff] %vm449, %v409
        %457 = vst.msk [vmem:[%s448 + $0x38] sm:$0xff] %vm449, %v412
        %458 = vst.msk [vmem:[%s448 + $0x40] sm:$0xff] %vm449, %v417
        %459 = vst.msk [vmem:[%s448 + $0x48] sm:$0xff] %vm449, %v420
        %460 = vst.msk [vmem:[%s448 + $0x50] sm:$0xff] %vm449, %v425
        %461 = vst.msk [vmem:[%s448 + $0x58] sm:$0xff] %vm449, %v428
        %462 = vst.msk [vmem:[%s448 + $0x60] sm:$0xff] %vm449, %v433
        %463 = vst.msk [vmem:[%s448 + $0x68] sm:$0xff] %vm449, %v436
        %464 = vst.msk [vmem:[%s448 + $0x70] sm:$0xff] %vm449, %v441
        %465 = vst.msk [vmem:[%s448 + $0x78] sm:$0xff] %vm449, %v444
        %v466 = vld [vmem:[#allocation3] sm:$0x1]
        %v467 = vsel %vm449, %v385, 0.0
        %v468 = vsel %vm449, %v388, 0.0
        %v469 = vadd.f32 %v467, %v468
        %v470 = vsel %vm449, %v393, 0.0
        %v471 = vadd.f32 %v469, %v470
        %v472 = vsel %vm449, %v396, 0.0
        %v473 = vadd.f32 %v471, %v472
        %v474 = vsel %vm449, %v401, 0.0
        %v475 = vadd.f32 %v473, %v474
        %v476 = vsel %vm449, %v404, 0.0
        %v477 = vadd.f32 %v475, %v476
        %v478 = vsel %vm449, %v409, 0.0
        %v479 = vadd.f32 %v477, %v478
        %v480 = vsel %vm449, %v412, 0.0
        %v481 = vadd.f32 %v479, %v480
        %v482 = vsel %vm449, %v417, 0.0
        %v483 = vadd.f32 %v481, %v482
        %v484 = vsel %vm449, %v420, 0.0
        %v485 = vadd.f32 %v483, %v484
        %v486 = vsel %vm449, %v425, 0.0
        %v487 = vadd.f32 %v485, %v486
        %v488 = vsel %vm449, %v428, 0.0
        %v489 = vadd.f32 %v487, %v488
        %v490 = vsel %vm449, %v433, 0.0
        %v491 = vadd.f32 %v489, %v490
        %v492 = vsel %vm449, %v436, 0.0
        %v493 = vadd.f32 %v491, %v492
        %v494 = vsel %vm449, %v441, 0.0
        %v495 = vadd.f32 %v493, %v494
        %v496 = vsel %vm449, %v444, 0.0
        %v497 = vadd.f32 %v495, %v496
        %v498 = vrot.slane %v497, 4
        %v499 = vadd.f32 %v497, %v498
        %v500 = vrot.slane %v499, 2
        %v501 = vadd.f32 %v499, %v500
        %v502 = vrot.slane %v501, 1
        %v503 = vadd.f32 %v501, %v502
        %v504 = vadd.f32 %v466, %v503
        %vm505 = vcmask 24576
        %506 = vst.msk [vmem:[#allocation3] sm:$0x1] %vm505, %v504
        %v507 = vld [vmem:[#allocation4] sm:$0x1]
        %v508 = vmul.f32 %v385, %v385
        %v509 = vmul.f32 %v388, %v388
        %v510 = vmul.f32 %v393, %v393
        %v511 = vmul.f32 %v396, %v396
        %v512 = vmul.f32 %v401, %v401
        %v513 = vmul.f32 %v404, %v404
        %v514 = vmul.f32 %v409, %v409
        %v515 = vmul.f32 %v412, %v412
        %v516 = vmul.f32 %v417, %v417
        %v517 = vmul.f32 %v420, %v420
        %v518 = vmul.f32 %v425, %v425
        %v519 = vmul.f32 %v428, %v428
        %v520 = vmul.f32 %v433, %v433
        %v521 = vmul.f32 %v436, %v436
        %v522 = vmul.f32 %v441, %v441
        %v523 = vmul.f32 %v444, %v444
        %v524 = vsel %vm449, %v508, 0.0
        %v525 = vsel %vm449, %v509, 0.0
        %v526 = vadd.f32 %v524, %v525
        %v527 = vsel %vm449, %v510, 0.0
        %v528 = vadd.f32 %v526, %v527
        %v529 = vsel %vm449, %v511, 0.0
        %v530 = vadd.f32 %v528, %v529
        %v531 = vsel %vm449, %v512, 0.0
        %v532 = vadd.f32 %v530, %v531
        %v533 = vsel %vm449, %v513, 0.0
        %v534 = vadd.f32 %v532, %v533
        %v535 = vsel %vm449, %v514, 0.0
        %v536 = vadd.f32 %v534, %v535
        %v537 = vsel %vm449, %v515, 0.0
        %v538 = vadd.f32 %v536, %v537
        %v539 = vsel %vm449, %v516, 0.0
        %v540 = vadd.f32 %v538, %v539
        %v541 = vsel %vm449, %v517, 0.0
        %v542 = vadd.f32 %v540, %v541
        %v543 = vsel %vm449, %v518, 0.0
        %v544 = vadd.f32 %v542, %v543
        %v545 = vsel %vm449, %v519, 0.0
        %v546 = vadd.f32 %v544, %v545
        %v547 = vsel %vm449, %v520, 0.0
        %v548 = vadd.f32 %v546, %v547
        %v549 = vsel %vm449, %v521, 0.0
        %v550 = vadd.f32 %v548, %v549
        %v551 = vsel %vm449, %v522, 0.0
        %v552 = vadd.f32 %v550, %v551
        %v553 = vsel %vm449, %v523, 0.0
        %v554 = vadd.f32 %v552, %v553
        %v555 = vrot.slane %v554, 4
        %v556 = vadd.f32 %v554, %v555
        %v557 = vrot.slane %v556, 2
        %v558 = vadd.f32 %v556, %v557
        %v559 = vrot.slane %v558, 1
        %v560 = vadd.f32 %v558, %v559
        %v561 = vadd.f32 %v507, %v560
        %562 = vst.msk [vmem:[#allocation4] sm:$0x1] %vm505, %v561
      $region44: #{hands_discriminator_forward.4} parent=35 // pred_fallthru
        _
      %p563 = scmp.eq.s32.totalorder %s19, 1
      %p564 = pnand %p563, %p234
      %p565 = pneg %p564
      // Predicated region
      $region45: #{hands_discriminator_forward.4} parent=35 // pred_check
        _
      $region46: #{hands_discriminator_forward.4} parent=35 // pred_check_branch
        %567 = sbr.rel (%p564) target = $region48
      $region47: #{hands_discriminator_forward.4} parent=35 // pred_region
        %v568 = vld [vmem:[#allocation3] sm:$0x1]
        %v569 = vmul.f32 %v568, 0.0078125
        %v570 = vld [vmem:[#allocation4] sm:$0x1]
        %v571 = vmul.f32 %v570, 0.0078125
        %v572 = vmul.f32 %v569, %v569
        %v573 = vsub.f32 %v571, %v572
        %v574 = vmax.f32 %v573, 0.0
        %v575 = vadd.f32 %v574, 1e-05
        %v576 = vrsqrt.pop %v575
        %v577 = vld [vmem:[%s2] sm:$0x1]
        %v578 = vmul.f32 %v577, %v576
        %vm579 = vcmask 24576
        %580 = vst.msk [vmem:[#allocation5] sm:$0x1] %vm579, %v578
        %v581 = vld [vmem:[%s3] sm:$0x1]
        %v582 = vmul.f32 %v569, %v578
        %v583 = vsub.f32 %v581, %v582
        %584 = vst.msk [vmem:[#allocation6] sm:$0x1] %vm579, %v583
      $region48: #{hands_discriminator_forward.4} parent=35 // pred_fallthru
        _
      // Predicated region
      $region49: #{hands_discriminator_forward.4} parent=35 // pred_check
        %p585 = pneg %p563
      $region50: #{hands_discriminator_forward.4} parent=35 // pred_check_branch
        %587 = sbr.rel (%p585) target = $region52
      $region51: #{hands_discriminator_forward.4} parent=35 // pred_region
        %s588 = smul.u32 %s20, 128
        %s589 = scalar_lea.vmem [#allocation2], %s588
        %v590 = vld [vmem:[%s589] sm:$0xff]
        %v591 = vld [vmem:[%s589 + $0x8] sm:$0xff]
        %v592 = vld [vmem:[%s589 + $0x10] sm:$0xff]
        %v593 = vld [vmem:[%s589 + $0x18] sm:$0xff]
        %v594 = vld [vmem:[%s589 + $0x20] sm:$0xff]
        %v595 = vld [vmem:[%s589 + $0x28] sm:$0xff]
        %v596 = vld [vmem:[%s589 + $0x30] sm:$0xff]
        %v597 = vld [vmem:[%s589 + $0x38] sm:$0xff]
        %v598 = vld [vmem:[%s589 + $0x40] sm:$0xff]
        %v599 = vld [vmem:[%s589 + $0x48] sm:$0xff]
        %v600 = vld [vmem:[%s589 + $0x50] sm:$0xff]
        %v601 = vld [vmem:[%s589 + $0x58] sm:$0xff]
        %v602 = vld [vmem:[%s589 + $0x60] sm:$0xff]
        %v603 = vld [vmem:[%s589 + $0x68] sm:$0xff]
        %v604 = vld [vmem:[%s589 + $0x70] sm:$0xff]
        %v605 = vld [vmem:[%s589 + $0x78] sm:$0xff]
        %v606 = vld [vmem:[#allocation5] sm:$0x1]
        %v608 = vlaneseq
        %v609 = vshrl.u32 %v608, 7
        %v610 = vsub.s32 0, %v609
        %v611 = vrot.slane %v606, %v610
        %v613 = vmul.f32 %v590, %v611
        %v614 = vmul.f32 %v591, %v611
        %v615 = vmul.f32 %v592, %v611
        %v616 = vmul.f32 %v593, %v611
        %v617 = vmul.f32 %v594, %v611
        %v618 = vmul.f32 %v595, %v611
        %v619 = vmul.f32 %v596, %v611
        %v620 = vmul.f32 %v597, %v611
        %v621 = vmul.f32 %v598, %v611
        %v622 = vmul.f32 %v599, %v611
        %v623 = vmul.f32 %v600, %v611
        %v624 = vmul.f32 %v601, %v611
        %v625 = vmul.f32 %v602, %v611
        %v626 = vmul.f32 %v603, %v611
        %v627 = vmul.f32 %v604, %v611
        %v628 = vmul.f32 %v605, %v611
        %v629 = vld [vmem:[#allocation6] sm:$0x1]
        %v631 = vlaneseq
        %v632 = vshrl.u32 %v631, 7
        %v633 = vsub.s32 0, %v632
        %v634 = vrot.slane %v629, %v633
        %v636 = vadd.f32 %v613, %v634
        %v637 = vadd.f32 %v614, %v634
        %v638 = vadd.f32 %v615, %v634
        %v639 = vadd.f32 %v616, %v634
        %v640 = vadd.f32 %v617, %v634
        %v641 = vadd.f32 %v618, %v634
        %v642 = vadd.f32 %v619, %v634
        %v643 = vadd.f32 %v620, %v634
        %v644 = vadd.f32 %v621, %v634
        %v645 = vadd.f32 %v622, %v634
        %v646 = vadd.f32 %v623, %v634
        %v647 = vadd.f32 %v624, %v634
        %v648 = vadd.f32 %v625, %v634
        %v649 = vadd.f32 %v626, %v634
        %v650 = vadd.f32 %v627, %v634
        %v651 = vadd.f32 %v628, %v634
        %vm652 = vcmp.ge.f32.partialorder %v636, 0.0
        %vm653 = vcmp.ge.f32.partialorder %v637, 0.0
        %vm654 = vcmp.ge.f32.partialorder %v638, 0.0
        %vm655 = vcmp.ge.f32.partialorder %v639, 0.0
        %vm656 = vcmp.ge.f32.partialorder %v640, 0.0
        %vm657 = vcmp.ge.f32.partialorder %v641, 0.0
        %vm658 = vcmp.ge.f32.partialorder %v642, 0.0
        %vm659 = vcmp.ge.f32.partialorder %v643, 0.0
        %vm660 = vcmp.ge.f32.partialorder %v644, 0.0
        %vm661 = vcmp.ge.f32.partialorder %v645, 0.0
        %vm662 = vcmp.ge.f32.partialorder %v646, 0.0
        %vm663 = vcmp.ge.f32.partialorder %v647, 0.0
        %vm664 = vcmp.ge.f32.partialorder %v648, 0.0
        %vm665 = vcmp.ge.f32.partialorder %v649, 0.0
        %vm666 = vcmp.ge.f32.partialorder %v650, 0.0
        %vm667 = vcmp.ge.f32.partialorder %v651, 0.0
        %v668 = vmul.f32 %v636, 0.2
        %v669 = vmul.f32 %v637, 0.2
        %v670 = vmul.f32 %v638, 0.2
        %v671 = vmul.f32 %v639, 0.2
        %v672 = vmul.f32 %v640, 0.2
        %v673 = vmul.f32 %v641, 0.2
        %v674 = vmul.f32 %v642, 0.2
        %v675 = vmul.f32 %v643, 0.2
        %v676 = vmul.f32 %v644, 0.2
        %v677 = vmul.f32 %v645, 0.2
        %v678 = vmul.f32 %v646, 0.2
        %v679 = vmul.f32 %v647, 0.2
        %v680 = vmul.f32 %v648, 0.2
        %v681 = vmul.f32 %v649, 0.2
        %v682 = vmul.f32 %v650, 0.2
        %v683 = vmul.f32 %v651, 0.2
        %v684 = vsel %vm652, %v636, %v668
        %v685 = vsel %vm653, %v637, %v669
        %v686 = vsel %vm654, %v638, %v670
        %v687 = vsel %vm655, %v639, %v671
        %v688 = vsel %vm656, %v640, %v672
        %v689 = vsel %vm657, %v641, %v673
        %v690 = vsel %vm658, %v642, %v674
        %v691 = vsel %vm659, %v643, %v675
        %v692 = vsel %vm660, %v644, %v676
        %v693 = vsel %vm661, %v645, %v677
        %v694 = vsel %vm662, %v646, %v678
        %v695 = vsel %vm663, %v647, %v679
        %v696 = vsel %vm664, %v648, %v680
        %v697 = vsel %vm665, %v649, %v681
        %v698 = vsel %vm666, %v650, %v682
        %v699 = vsel %vm667, %v651, %v683
        %v700 = vpack.c.bf16 %v685, %v684
        %v701 = vpack.c.bf16 %v687, %v686
        %v702 = vpack.c.bf16 %v689, %v688
        %v703 = vpack.c.bf16 %v691, %v690
        %v704 = vpack.c.bf16 %v693, %v692
        %v705 = vpack.c.bf16 %v695, %v694
        %v706 = vpack.c.bf16 %v697, %v696
        %v707 = vpack.c.bf16 %v699, %v698
        %v716 = vunpack.c.l.b16 %v700
        %v717 = vunpack.c.h.b16 %v700
        %v718 = vunpack.c.l.b16 %v701
        %v719 = vunpack.c.h.b16 %v701
        %v720 = vunpack.c.l.b16 %v702
        %v721 = vunpack.c.h.b16 %v702
        %v722 = vunpack.c.l.b16 %v703
        %v723 = vunpack.c.h.b16 %v703
        %v724 = vunpack.c.l.b16 %v704
        %v725 = vunpack.c.h.b16 %v704
        %v726 = vunpack.c.l.b16 %v705
        %v727 = vunpack.c.h.b16 %v705
        %v728 = vunpack.c.l.b16 %v706
        %v729 = vunpack.c.h.b16 %v706
        %v730 = vunpack.c.l.b16 %v707
        %v731 = vunpack.c.h.b16 %v707
        %v732 = vpack.c.b16 %v716, %v716
        %v733 = vpack.c.b16 %v717, %v717
        %v734 = vpack.c.b16 %v718, %v718
        %v735 = vpack.c.b16 %v719, %v719
        %v736 = vpack.c.b16 %v720, %v720
        %v737 = vpack.c.b16 %v721, %v721
        %v738 = vpack.c.b16 %v722, %v722
        %v739 = vpack.c.b16 %v723, %v723
        %v740 = vpack.c.b16 %v724, %v724
        %v741 = vpack.c.b16 %v725, %v725
        %v742 = vpack.c.b16 %v726, %v726
        %v743 = vpack.c.b16 %v727, %v727
        %v744 = vpack.c.b16 %v728, %v728
        %v745 = vpack.c.b16 %v729, %v729
        %v746 = vpack.c.b16 %v730, %v730
        %v747 = vpack.c.b16 %v731, %v731
        %vm764 = vcmask 27648
        %765 = vst.msk [vmem:[%s229] sm:$0xf] %vm764, %v732
        %766 = vst.msk [vmem:[%s229 + $0x4] sm:$0xf] %vm764, %v733
        %767 = vst.msk [vmem:[%s229 + $0x8] sm:$0xf] %vm764, %v734
        %768 = vst.msk [vmem:[%s229 + $0xc] sm:$0xf] %vm764, %v735
        %769 = vst.msk [vmem:[%s229 + $0x10] sm:$0xf] %vm764, %v736
        %770 = vst.msk [vmem:[%s229 + $0x14] sm:$0xf] %vm764, %v737
        %771 = vst.msk [vmem:[%s229 + $0x18] sm:$0xf] %vm764, %v738
        %772 = vst.msk [vmem:[%s229 + $0x1c] sm:$0xf] %vm764, %v739
        %773 = vst.msk [vmem:[%s229 + $0x20] sm:$0xf] %vm764, %v740
        %774 = vst.msk [vmem:[%s229 + $0x24] sm:$0xf] %vm764, %v741
        %775 = vst.msk [vmem:[%s229 + $0x28] sm:$0xf] %vm764, %v742
        %776 = vst.msk [vmem:[%s229 + $0x2c] sm:$0xf] %vm764, %v743
        %777 = vst.msk [vmem:[%s229 + $0x30] sm:$0xf] %vm764, %v744
        %778 = vst.msk [vmem:[%s229 + $0x34] sm:$0xf] %vm764, %v745
        %779 = vst.msk [vmem:[%s229 + $0x38] sm:$0xf] %vm764, %v746
        %780 = vst.msk [vmem:[%s229 + $0x3c] sm:$0xf] %vm764, %v747
      $region52: #{hands_discriminator_forward.4} parent=35 // pred_fallthru
        _
      %s781 = smul.u32 %s20, %s19
      %s782 = smul.u32 16, %s781
      %p783 = scmp.lt.s32.totalorder %s782, 15
      %s784 = scalar_select %p783, %s782, 15
      %s785 = smul.addr %s784, 4
      %s786 = scalar_lea.vmem %s4, %s785
      // Predicated region
      $region53: #{hands_discriminator_forward.4} parent=35 // pred_check
        %p787 = pneg %p140
      $region54: #{hands_discriminator_forward.4} parent=35 // pred_check_branch
        %789 = sbr.rel (%p787) target = $region56
      $region55: #{hands_discriminator_forward.4} parent=35 // pred_region
        %s790 = smul.u32 %s20, %s19
        %s791 = smul.u32 16, %s790
      $region56: #{hands_discriminator_forward.4} parent=35 // pred_fallthru
        _
    $region36: #{hands_discriminator_forward.4} parent=5 // pred_fallthru
      _
    %p792 = scmp.le.s32.totalorder 2, %s10
    // Predicated region
    $region57: #{hands_discriminator_forward.4} parent=5 // pred_check
      %p793 = pneg %p792
    $region58: #{hands_discriminator_forward.4} parent=5 // pred_check_branch
      %795 = sbr.rel (%p793) target = $region60
    $region59: #{hands_discriminator_forward.4} parent=5 // pred_region
      %s796 = ssub.s32 %s10, 2
      // Predicated region
      $region61: #{hands_discriminator_forward.4} parent=59 // pred_check
        %p797 = pneg %p146
      $region62: #{hands_discriminator_forward.4} parent=59 // pred_check_branch
        %799 = sbr.rel (%p797) target = $region64
      $region63: #{hands_discriminator_forward.4} parent=59 // pred_region
        %s800 = smul.u32 %s22, %s21
        %s801 = smul.u32 16, %s800
        %p802 = scmp.lt.s32.totalorder %s801, 15
        %s803 = scalar_select %p802, %s801, 15
        %s804 = smul.addr %s803, 4
        %s805 = scalar_lea.vmem %s4, %s804
      $region64: #{hands_discriminator_forward.4} parent=59 // pred_fallthru
        _
    $region60: #{hands_discriminator_forward.4} parent=5 // pred_fallthru
      _
  $region6: #{hands_discriminator_forward.4} parent=0 // loop_footer
    %s14 = sadd.s32 1, %s10
  $region7: #{hands_discriminator_forward.4} parent=0 // loop_footer_branch
    %9 = sbr.rel target = $region3
  $region8: #{hands_discriminator_forward.4} parent=0 // loop_exit
    _

// kernel: hands_discriminator_forward.5
$region0: #{hands_discriminator_forward.5}
  #allocation0 [shape = 'u32[]', space=smem, size = 0x4, offset = 0x4, fixed_abs, tag = 'smem constant byte address 0x4 - core index']
  #allocation1 [shape = 'u32[144,128]{1,0:T(1,128)}', space=vmem, size = 0x12000, scoped, tag = 'internal scratch']
  #allocation2 [shape = 'f32[32,8]{1,0:T(8,128)}', space=vmem, size = 0x4000, scoped, tag = 'scratch operand']
  #allocation3 [shape = 'f32[1,8]{1,0:T(1,128)}', space=vmem, size = 0x200, scoped, tag = 'scratch operand']
  #allocation4 [shape = 'f32[1,8]{1,0:T(1,128)}', space=vmem, size = 0x200, scoped, tag = 'scratch operand']
  #allocation5 [shape = 'f32[1,8]{1,0:T(1,128)}', space=vmem, size = 0x200, scoped, tag = 'scratch operand']
  #allocation6 [shape = 'f32[1,8]{1,0:T(1,128)}', space=vmem, size = 0x200, scoped, tag = 'scratch operand']
  %s0 = inlined_call_operand.vmem [shape: bf16[32,64], index: 0, kind: input, shape index: {}]
  %s1 = inlined_call_operand.vmem [shape: bf16[64,8], index: 1, kind: input, shape index: {}]
  %s2 = inlined_call_operand.vmem [shape: f32[1,8], index: 2, kind: input, shape index: {}]
  %s3 = inlined_call_operand.vmem [shape: f32[1,8], index: 3, kind: input, shape index: {}]
  %s4 = inlined_call_operand.vmem [shape: bf16[32,8], index: 4, kind: output, shape index: {}]
  %s5 = sld [smem:[#allocation0]]
  $region65: #{hands_discriminator_forward.5} parent=0
    _
  %s7 = ssub.s32 1, %s5
  %s8 = scalar_select 0, %s7, %s5
  loop: start=0, step=1, limit=4
  $region2: #{hands_discriminator_forward.5} parent=0 // loop_pre_header
    _
  $region3: #{hands_discriminator_forward.5} parent=0 // loop_header
    %s10 = sphi 0, %s14
    %p11 = scmp.ge.s32.totalorder %s10, 4
    %s17 = sphi 0, %s29
    %s18 = sphi 0, %s25
    %s19 = sphi 0, %s17
    %s20 = sphi 0, %s18
    %s21 = sphi 0, %s19
    %s22 = sphi 0, %s20
    %s36 = sphi 0, %s38
    %s39 = sphi 0, %s36
    %s40 = sphi 0, %s39
    %s56 = sphi 0, %s40
    %s60 = sphi 0, %s60
    %s62 = sphi 0, %s60
    %s63 = sphi 0, %s62
    %s77 = sphi 0, %s63
    %s81 = sphi 0, %s81
    %s83 = sphi 0, %s81
    %s84 = sphi 0, %s83
    %s98 = sphi 0, %s84
    %s102 = sphi 0, %s102
    %s104 = sphi 0, %s102
    %s105 = sphi 0, %s104
    %s119 = sphi 0, %s105
    %s127 = sphi 0, %s129
    %s130 = sphi 0, %s127
    %s131 = sphi 0, %s130
    %s147 = sphi 0, %s131
  $region4: #{hands_discriminator_forward.5} parent=0 // loop_header_branch
    %13 = sbr.rel (%p11) target = $region8
  $region5: #{hands_discriminator_forward.5} parent=0 // loop_body
    %s15 = ssub.s32 %s10, 1
    %s16 = ssub.s32 %s10, 2
    %s23 = sadd.s32 1, %s18
    %p24 = scmp.ge.s32.totalorder %s23, 1
    %s25 = scalar_select %p24, 0, %s23
    %s26 = sadd.s32 1, %s17
    %s27 = scalar_select %p24, %s26, %s17
    %p28 = scmp.ge.s32.totalorder %s27, 2
    %s29 = scalar_select %p28, 0, %s27
    %s30 = ssub.s32 1, %s17
    %s31 = smul.u32 %s18, %s30
    %s32 = ssub.s32 1, %s29
    %s33 = smul.u32 %s25, %s32
    %s34 = ssub.s32 %s31, %s33
    %p35 = scmp.eq.s32.totalorder %s34, 0
    %s37 = sadd.s32 %s36, 1
    %s38 = scalar_select %p35, %s36, %s37
    %p41 = pneg %p35
    %p42 = scmp.eq.s32.totalorder %s10, 1
    %p43 = por %p41, %p42
    %p44 = scmp.ne.s32.totalorder %s36, %s39
    %p45 = scmp.eq.s32.totalorder %s10, 0
    %p46 = por %p44, %p45
    %p47 = scmp.ne.s32.totalorder %s36, %s39
    %p48 = scmp.eq.s32.totalorder %s15, 1
    %p49 = por %p47, %p48
    %p50 = scmp.ne.s32.totalorder %s39, %s40
    %p51 = scmp.eq.s32.totalorder %s15, 0
    %p52 = por %p50, %p51
    %p53 = scmp.ne.s32.totalorder %s39, %s40
    %p54 = scmp.eq.s32.totalorder %s16, 1
    %p55 = por %p53, %p54
    %p57 = scmp.ne.s32.totalorder %s40, %s56
    %p58 = scmp.eq.s32.totalorder %s16, 0
    %p59 = por %p57, %p58
    %s61 = sadd.s32 %s60, 1
    %p64 = scmp.eq.s32.totalorder %s10, 1
    %p65 = scmp.ne.s32.totalorder %s60, %s62
    %p66 = scmp.eq.s32.totalorder %s10, 0
    %p67 = por %p65, %p66
    %p68 = scmp.ne.s32.totalorder %s60, %s62
    %p69 = scmp.eq.s32.totalorder %s15, 1
    %p70 = por %p68, %p69
    %p71 = scmp.ne.s32.totalorder %s62, %s63
    %p72 = scmp.eq.s32.totalorder %s15, 0
    %p73 = por %p71, %p72
    %p74 = scmp.ne.s32.totalorder %s62, %s63
    %p75 = scmp.eq.s32.totalorder %s16, 1
    %p76 = por %p74, %p75
    %p78 = scmp.ne.s32.totalorder %s63, %s77
    %p79 = scmp.eq.s32.totalorder %s16, 0
    %p80 = por %p78, %p79
    %s82 = sadd.s32 %s81, 1
    %p85 = scmp.eq.s32.totalorder %s10, 1
    %p86 = scmp.ne.s32.totalorder %s81, %s83
    %p87 = scmp.eq.s32.totalorder %s10, 0
    %p88 = por %p86, %p87
    %p89 = scmp.ne.s32.totalorder %s81, %s83
    %p90 = scmp.eq.s32.totalorder %s15, 1
    %p91 = por %p89, %p90
    %p92 = scmp.ne.s32.totalorder %s83, %s84
    %p93 = scmp.eq.s32.totalorder %s15, 0
    %p94 = por %p92, %p93
    %p95 = scmp.ne.s32.totalorder %s83, %s84
    %p96 = scmp.eq.s32.totalorder %s16, 1
    %p97 = por %p95, %p96
    %p99 = scmp.ne.s32.totalorder %s84, %s98
    %p100 = scmp.eq.s32.totalorder %s16, 0
    %p101 = por %p99, %p100
    %s103 = sadd.s32 %s102, 1
    %p106 = scmp.eq.s32.totalorder %s10, 1
    %p107 = scmp.ne.s32.totalorder %s102, %s104
    %p108 = scmp.eq.s32.totalorder %s10, 0
    %p109 = por %p107, %p108
    %p110 = scmp.ne.s32.totalorder %s102, %s104
    %p111 = scmp.eq.s32.totalorder %s15, 1
    %p112 = por %p110, %p111
    %p113 = scmp.ne.s32.totalorder %s104, %s105
    %p114 = scmp.eq.s32.totalorder %s15, 0
    %p115 = por %p113, %p114
    %p116 = scmp.ne.s32.totalorder %s104, %s105
    %p117 = scmp.eq.s32.totalorder %s16, 1
    %p118 = por %p116, %p117
    %p120 = scmp.ne.s32.totalorder %s105, %s119
    %p121 = scmp.eq.s32.totalorder %s16, 0
    %p122 = por %p120, %p121
    %s123 = smul.u32 %s18, %s17
    %s124 = smul.u32 %s25, %s29
    %s125 = ssub.s32 %s123, %s124
    %p126 = scmp.eq.s32.totalorder %s125, 0
    %s128 = sadd.s32 %s127, 1
    %s129 = scalar_select %p126, %s127, %s128
    %p132 = pneg %p126
    %p133 = scmp.eq.s32.totalorder %s10, 1
    %p134 = por %p132, %p133
    %p135 = scmp.ne.s32.totalorder %s127, %s130
    %p136 = scmp.eq.s32.totalorder %s10, 0
    %p137 = por %p135, %p136
    %p138 = scmp.ne.s32.totalorder %s127, %s130
    %p139 = scmp.eq.s32.totalorder %s15, 1
    %p140 = por %p138, %p139
    %p141 = scmp.ne.s32.totalorder %s130, %s131
    %p142 = scmp.eq.s32.totalorder %s15, 0
    %p143 = por %p141, %p142
    %p144 = scmp.ne.s32.totalorder %s130, %s131
    %p145 = scmp.eq.s32.totalorder %s16, 1
    %p146 = por %p144, %p145
    %p148 = scmp.ne.s32.totalorder %s131, %s147
    %p149 = scmp.eq.s32.totalorder %s16, 0
    %p150 = por %p148, %p149
    %p151 = scmp.le.s32.totalorder 1, %s10
    %p152 = scmp.lt.s32.totalorder %s10, 3
    %p153 = pnand %p151, %p152
    %p154 = pneg %p153
    // Predicated region
    $region9: #{hands_discriminator_forward.5} parent=5 // pred_check
      _
    $region10: #{hands_discriminator_forward.5} parent=5 // pred_check_branch
      %156 = sbr.rel (%p153) target = $region12
    $region11: #{hands_discriminator_forward.5} parent=5 // pred_region
      %s157 = ssub.s32 %s10, 1
      // Predicated region
      $region13: #{hands_discriminator_forward.5} parent=11 // pred_check
        %p158 = pneg %p73
      $region14: #{hands_discriminator_forward.5} parent=11 // pred_check_branch
        %160 = sbr.rel (%p158) target = $region16
      $region15: #{hands_discriminator_forward.5} parent=11 // pred_region
        _
      $region16: #{hands_discriminator_forward.5} parent=11 // pred_fallthru
        _
      // Predicated region
      $region17: #{hands_discriminator_forward.5} parent=11 // pred_check
        %p161 = pneg %p94
      $region18: #{hands_discriminator_forward.5} parent=11 // pred_check_branch
        %163 = sbr.rel (%p161) target = $region20
      $region19: #{hands_discriminator_forward.5} parent=11 // pred_region
        _
      $region20: #{hands_discriminator_forward.5} parent=11 // pred_fallthru
        _
      // Predicated region
      $region21: #{hands_discriminator_forward.5} parent=11 // pred_check
        %p164 = pneg %p115
      $region22: #{hands_discriminator_forward.5} parent=11 // pred_check_branch
        %166 = sbr.rel (%p164) target = $region24
      $region23: #{hands_discriminator_forward.5} parent=11 // pred_region
        _
      $region24: #{hands_discriminator_forward.5} parent=11 // pred_fallthru
        _
    $region12: #{hands_discriminator_forward.5} parent=5 // pred_fallthru
      _
    %p167 = scmp.lt.s32.totalorder %s10, 2
    // Predicated region
    $region25: #{hands_discriminator_forward.5} parent=5 // pred_check
      %p168 = pneg %p167
    $region26: #{hands_discriminator_forward.5} parent=5 // pred_check_branch
      %170 = sbr.rel (%p168) target = $region28
    $region27: #{hands_discriminator_forward.5} parent=5 // pred_region
      // Predicated region
      $region29: #{hands_discriminator_forward.5} parent=27 // pred_check
        %p171 = pneg %p46
      $region30: #{hands_discriminator_forward.5} parent=27 // pred_check_branch
        %173 = sbr.rel (%p171) target = $region32
      $region31: #{hands_discriminator_forward.5} parent=27 // pred_region
        %s174 = ssub.s32 1, %s17
        %s175 = smul.u32 %s18, %s174
        %s176 = smul.u32 4, %s175
        %p177 = scmp.lt.s32.totalorder %s176, 3
        %s178 = scalar_select %p177, %s176, 3
        %s179 = smul.addr %s178, 4
        %s180 = scalar_lea.vmem %s0, %s179
        %s181 = ssub.s32 1, %s17
        %s182 = smul.u32 %s18, %s181
        %s183 = smul.u32 4, %s182
      $region32: #{hands_discriminator_forward.5} parent=27 // pred_fallthru
        _
    $region28: #{hands_discriminator_forward.5} parent=5 // pred_fallthru
      _
    %p184 = scmp.le.s32.totalorder 1, %s10
    %p185 = scmp.lt.s32.totalorder %s10, 3
    %p186 = pnand %p184, %p185
    %p187 = pneg %p186
    // Predicated region
    $region33: #{hands_discriminator_forward.5} parent=5 // pred_check
      _
    $region34: #{hands_discriminator_forward.5} parent=5 // pred_check_branch
      %189 = sbr.rel (%p186) target = $region36
    $region35: #{hands_discriminator_forward.5} parent=5 // pred_region
      %s190 = ssub.s32 %s10, 1
      %s191 = ssub.s32 1, %s19
      %s192 = smul.u32 %s20, %s191
      %s193 = smul.u32 4, %s192
      %p194 = scmp.lt.s32.totalorder %s193, 3
      %s195 = scalar_select %p194, %s193, 3
      %s196 = smul.addr %s195, 4
      %s197 = scalar_lea.vmem %s0, %s196
      %p198 = pneg %p52
      %p199 = pneg %p49
      %p200 = pneg %p73
      %p201 = pneg %p70
      %p202 = pneg %p94
      %p203 = pneg %p91
      %p204 = pneg %p115
      %p205 = pneg %p112
      %p206 = pneg %p143
      %p207 = pneg %p140
      %s208 = smul.u32 %s20, %s19
      %s209 = smul.u32 4, %s208
      %p210 = scmp.lt.s32.totalorder %s209, 3
      %s211 = scalar_select %p210, %s209, 3
      %s212 = smul.addr %s211, 4
      %s213 = scalar_lea.vmem %s4, %s212
      %s214 = ssub.s32 1, %s19
      %s215 = smul.u32 %s20, %s214
      %s216 = smul.u32 4, %s215
      %p217 = scmp.lt.s32.totalorder %s216, 3
      %s218 = scalar_select %p217, %s216, 3
      %s219 = smul.addr %s218, 4
      %s220 = scalar_lea.vmem %s0, %s219
      %s221 = ssub.s32 1, %s19
      %s222 = smul.u32 %s20, %s221
      %s223 = smul.u32 4, %s222
      %s224 = smul.u32 %s20, %s19
      %s225 = smul.u32 4, %s224
      %p226 = scmp.lt.s32.totalorder %s225, 3
      %s227 = scalar_select %p226, %s225, 3
      %s228 = smul.addr %s227, 4
      %s229 = scalar_lea.vmem %s4, %s228
      %s230 = smul.u32 %s20, %s19
      %s231 = smul.u32 4, %s230
      %p233 = scmp.eq.s32.totalorder %s19, 0
      %p234 = scmp.eq.s32.totalorder %s20, 0
      %p235 = pnand %p233, %p234
      %p236 = pneg %p235
      // Predicated region
      $region37: #{hands_discriminator_forward.5} parent=35 // pred_check
        _
      $region38: #{hands_discriminator_forward.5} parent=35 // pred_check_branch
        %238 = sbr.rel (%p235) target = $region40
      $region39: #{hands_discriminator_forward.5} parent=35 // pred_region
        %vm239 = vcmask 57344
        %240 = vst.msk [vmem:[#allocation3] sm:$0x1] %vm239, 0.0
        %241 = vst.msk [vmem:[#allocation4] sm:$0x1] %vm239, 0.0
      $region40: #{hands_discriminator_forward.5} parent=35 // pred_fallthru
        _
      // Predicated region
      $region41: #{hands_discriminator_forward.5} parent=35 // pred_check
        %p242 = pneg %p233
      $region42: #{hands_discriminator_forward.5} parent=35 // pred_check_branch
        %244 = sbr.rel (%p242) target = $region44
      $region43: #{hands_discriminator_forward.5} parent=35 // pred_region
        %v245 = vld [vmem:[%s220] sm:$0xf]
        %v246 = vld [vmem:[%s220 + $0x4] sm:$0xf]
        %v247 = vld [vmem:[%s220 + $0x8] sm:$0xf]
        %v248 = vld [vmem:[%s220 + $0xc] sm:$0xf]
        %v249 = vld [vmem:[%s1] sm:$0xf]
        %v250 = vld [vmem:[%s1 + $0x4] sm:$0xf]
        %v251 = vld [vmem:[%s1 + $0x8] sm:$0xf]
        %v252 = vld [vmem:[%s1 + $0xc] sm:$0xf]
        %v253 = vld [vmem:[%s1 + $0x10] sm:$0xf]
        %v254 = vld [vmem:[%s1 + $0x14] sm:$0xf]
        %v255 = vld [vmem:[%s1 + $0x18] sm:$0xf]
        %v256 = vld [vmem:[%s1 + $0x1c] sm:$0xf]
        %v261 = vunpack.c.l.b16 %v245
        %v262 = vunpack.c.l.b16 %v246
        %v263 = vunpack.c.l.b16 %v247
        %v264 = vunpack.c.l.b16 %v248
        %v265 = vpack.c.b16 %v262, %v261
        %v266 = vpack.c.b16 %v264, %v263
        %v275 = vunpack.c.l.b16 %v249
        %v276 = vunpack.c.l.b16 %v250
        %v277 = vunpack.c.l.b16 %v251
        %v278 = vunpack.c.l.b16 %v252
        %v279 = vunpack.c.l.b16 %v253
        %v280 = vunpack.c.l.b16 %v254
        %v281 = vunpack.c.l.b16 %v255
        %v282 = vunpack.c.l.b16 %v256
        %v283 = vpack.c.b16 %v276, %v275
        %v284 = vpack.c.b16 %v278, %v277
        %v285 = vpack.c.b16 %v280, %v279
        %v286 = vpack.c.b16 %v282, %v281
        %vm291 = vcmask 523264
        %v293 = vsel %vm291, %v265, 0
        %v296 = vsel %vm291, %v266, 0
        %298 = vmatprep.subr.bf16.mxu0 0
        %299 = vmatpush1.bf16.msra.mxu0 0
        %300 = vmatprep.subr.bf16.mxu0 0
        %301 = vmatpush1.bf16.msra.mxu0 0
        %302 = vmatprep.subr.bf16.mxu0 0
        %303 = vmatpush1.bf16.msra.mxu0 0
        %304 = vmatprep.subr.bf16.mxu0 0
        %305 = vmatpush1.bf16.msra.mxu0 0
        %306 = vmatprep.subr.bf16.mxu0 0
        %307 = vmatpush1.bf16.msra.mxu0 %v286
        %308 = vmatprep.subr.bf16.mxu0 0
        %309 = vmatpush1.bf16.msra.mxu0 %v285
        %310 = vmatprep.subr.bf16.mxu0 0
        %311 = vmatpush1.bf16.msra.mxu0 %v284
        %312 = vmatprep.subr.bf16.mxu0 0
        %313 = vmatpush1.bf16.msra.mxu0 %v283
        %314 = vmatprep.subr.bf16.mxu0 0
        %315 = vmatpush2.bf16.msra.mxu0 0
        %316 = vmatprep.subr.bf16.mxu0 0
        %317 = vmatpush2.bf16.msra.mxu0 0
        %318 = vmatprep.subr.bf16.mxu0 0
        %319 = vmatpush2.bf16.msra.mxu0 0
        %320 = vmatprep.subr.bf16.mxu0 0
        %321 = vmatpush2.bf16.msra.mxu0 0
        %322 = vmatprep.subr.bf16.mxu0 0
        %323 = vmatpush2.bf16.msra.mxu0 0
        %324 = vmatprep.subr.bf16.mxu0 0
        %325 = vmatpush2.bf16.msra.mxu0 0
        %326 = vmatprep.subr.bf16.mxu0 0
        %327 = vmatpush2.bf16.msra.mxu0 0
        %328 = vmatprep.subr.bf16.mxu0 0
        %329 = vmatpush2.bf16.msra.mxu0 0
        %330 = vmatprep.mubr.bf16.mxu0 0
        %331 = vmatmul.mubr.bf16.gmra.mxu0 %v293
        %v332 = vpop.f32.mrf.mxu0
        %v333 = vadd.f32 0.0, %v332
        %v334 = vpop.f32.mrf.mxu0
        %v335 = vpop.f32.mrf.mxu0
        %v336 = vadd.f32 0.0, %v335
        %v337 = vpop.f32.mrf.mxu0
        %338 = vmatprep.mubr.bf16.mxu0 0
        %339 = vmatmul.mubr.bf16.gmra.mxu0 %v296
        %v340 = vpop.f32.mrf.mxu0
        %v341 = vadd.f32 0.0, %v340
        %v342 = vpop.f32.mrf.mxu0
        %v343 = vpop.f32.mrf.mxu0
        %v344 = vadd.f32 0.0, %v343
        %v345 = vpop.f32.mrf.mxu0
        %346 = vdwg.mxu0
        %s347 = smul.u32 %s20, 32
        %s348 = scalar_lea.vmem [#allocation2], %s347
        %vm349 = vcmask 64512
        %350 = vst.msk [vmem:[%s348] sm:$0xff] %vm349, %v333
        %351 = vst.msk [vmem:[%s348 + $0x8] sm:$0xff] %vm349, %v336
        %352 = vst.msk [vmem:[%s348 + $0x10] sm:$0xff] %vm349, %v341
        %353 = vst.msk [vmem:[%s348 + $0x18] sm:$0xff] %vm349, %v344
        %v354 = vld [vmem:[#allocation3] sm:$0x1]
        %v355 = vsel %vm349, %v333, 0.0
        %v356 = vsel %vm349, %v336, 0.0
        %v357 = vadd.f32 %v355, %v356
        %v358 = vsel %vm349, %v341, 0.0
        %v359 = vadd.f32 %v357, %v358
        %v360 = vsel %vm349, %v344, 0.0
        %v361 = vadd.f32 %v359, %v360
        %v362 = vrot.slane %v361, 4
        %v363 = vadd.f32 %v361, %v362
        %v364 = vrot.slane %v363, 2
        %v365 = vadd.f32 %v363, %v364
        %v366 = vrot.slane %v365, 1
        %v367 = vadd.f32 %v365, %v366
        %v368 = vadd.f32 %v354, %v367
        %vm369 = vcmask 57344
        %370 = vst.msk [vmem:[#allocation3] sm:$0x1] %vm369, %v368
        %v371 = vld [vmem:[#allocation4] sm:$0x1]
        %v372 = vmul.f32 %v333, %v333
        %v373 = vmul.f32 %v336, %v336
        %v374 = vmul.f32 %v341, %v341
        %v375 = vmul.f32 %v344, %v344
        %v376 = vsel %vm349, %v372, 0.0
        %v377 = vsel %vm349, %v373, 0.0
        %v378 = vadd.f32 %v376, %v377
        %v379 = vsel %vm349, %v374, 0.0
        %v380 = vadd.f32 %v378, %v379
        %v381 = vsel %vm349, %v375, 0.0
        %v382 = vadd.f32 %v380, %v381
        %v383 = vrot.slane %v382, 4
        %v384 = vadd.f32 %v382, %v383
        %v385 = vrot.slane %v384, 2
        %v386 = vadd.f32 %v384, %v385
        %v387 = vrot.slane %v386, 1
        %v388 = vadd.f32 %v386, %v387
        %v389 = vadd.f32 %v371, %v388
        %390 = vst.msk [vmem:[#allocation4] sm:$0x1] %vm369, %v389
      $region44: #{hands_discriminator_forward.5} parent=35 // pred_fallthru
        _
      %p391 = scmp.eq.s32.totalorder %s19, 1
      %p392 = pnand %p391, %p234
      %p393 = pneg %p392
      // Predicated region
      $region45: #{hands_discriminator_forward.5} parent=35 // pred_check
        _
      $region46: #{hands_discriminator_forward.5} parent=35 // pred_check_branch
        %395 = sbr.rel (%p392) target = $region48
      $region47: #{hands_discriminator_forward.5} parent=35 // pred_region
        %v396 = vld [vmem:[#allocation3] sm:$0x1]
        %v397 = vmul.f32 %v396, 0.03125
        %v398 = vld [vmem:[#allocation4] sm:$0x1]
        %v399 = vmul.f32 %v398, 0.03125
        %v400 = vmul.f32 %v397, %v397
        %v401 = vsub.f32 %v399, %v400
        %v402 = vmax.f32 %v401, 0.0
        %v403 = vadd.f32 %v402, 1e-05
        %v404 = vrsqrt.pop %v403
        %v405 = vld [vmem:[%s2] sm:$0x1]
        %v406 = vmul.f32 %v405, %v404
        %vm407 = vcmask 57344
        %408 = vst.msk [vmem:[#allocation5] sm:$0x1] %vm407, %v406
        %v409 = vld [vmem:[%s3] sm:$0x1]
        %v410 = vmul.f32 %v397, %v406
        %v411 = vsub.f32 %v409, %v410
        %412 = vst.msk [vmem:[#allocation6] sm:$0x1] %vm407, %v411
      $region48: #{hands_discriminator_forward.5} parent=35 // pred_fallthru
        _
      // Predicated region
      $region49: #{hands_discriminator_forward.5} parent=35 // pred_check
        %p413 = pneg %p391
      $region50: #{hands_discriminator_forward.5} parent=35 // pred_check_branch
        %415 = sbr.rel (%p413) target = $region52
      $region51: #{hands_discriminator_forward.5} parent=35 // pred_region
        %s416 = smul.u32 %s20, 32
        %s417 = scalar_lea.vmem [#allocation2], %s416
        %v418 = vld [vmem:[%s417] sm:$0xff]
        %v419 = vld [vmem:[%s417 + $0x8] sm:$0xff]
        %v420 = vld [vmem:[%s417 + $0x10] sm:$0xff]
        %v421 = vld [vmem:[%s417 + $0x18] sm:$0xff]
        %v422 = vld [vmem:[#allocation5] sm:$0x1]
        %v424 = vlaneseq
        %v425 = vshrl.u32 %v424, 7
        %v426 = vsub.s32 0, %v425
        %v427 = vrot.slane %v422, %v426
        %v429 = vmul.f32 %v418, %v427
        %v430 = vmul.f32 %v419, %v427
        %v431 = vmul.f32 %v420, %v427
        %v432 = vmul.f32 %v421, %v427
        %v433 = vld [vmem:[#allocation6] sm:$0x1]
        %v435 = vlaneseq
        %v436 = vshrl.u32 %v435, 7
        %v437 = vsub.s32 0, %v436
        %v438 = vrot.slane %v433, %v437
        %v440 = vadd.f32 %v429, %v438
        %v441 = vadd.f32 %v430, %v438
        %v442 = vadd.f32 %v431, %v438
        %v443 = vadd.f32 %v432, %v438
        %vm444 = vcmp.ge.f32.partialorder %v440, 0.0
        %vm445 = vcmp.ge.f32.partialorder %v441, 0.0
        %vm446 = vcmp.ge.f32.partialorder %v442, 0.0
        %vm447 = vcmp.ge.f32.partialorder %v443, 0.0
        %v448 = vmul.f32 %v440, 0.2
        %v449 = vmul.f32 %v441, 0.2
        %v450 = vmul.f32 %v442, 0.2
        %v451 = vmul.f32 %v443, 0.2
        %v452 = vsel %vm444, %v440, %v448
        %v453 = vsel %vm445, %v441, %v449
        %v454 = vsel %vm446, %v442, %v450
        %v455 = vsel %vm447, %v443, %v451
        %v456 = vpack.c.bf16 %v453, %v452
        %v457 = vpack.c.bf16 %v455, %v454
        %v460 = vunpack.c.l.b16 %v456
        %v461 = vunpack.c.h.b16 %v456
        %v462 = vunpack.c.l.b16 %v457
        %v463 = vunpack.c.h.b16 %v457
        %v464 = vpack.c.b16 %v460, %v460
        %v465 = vpack.c.b16 %v461, %v461
        %v466 = vpack.c.b16 %v462, %v462
        %v467 = vpack.c.b16 %v463, %v463
        %vm472 = vcmask 60416
        %473 = vst.msk [vmem:[%s229] sm:$0xf] %vm472, %v464
        %474 = vst.msk [vmem:[%s229 + $0x4] sm:$0xf] %vm472, %v465
        %475 = vst.msk [vmem:[%s229 + $0x8] sm:$0xf] %vm472, %v466
        %476 = vst.msk [vmem:[%s229 + $0xc] sm:$0xf] %vm472, %v467
      $region52: #{hands_discriminator_forward.5} parent=35 // pred_fallthru
        _
      %s477 = smul.u32 %s20, %s19
      %s478 = smul.u32 4, %s477
      %p479 = scmp.lt.s32.totalorder %s478, 3
      %s480 = scalar_select %p479, %s478, 3
      %s481 = smul.addr %s480, 4
      %s482 = scalar_lea.vmem %s4, %s481
      // Predicated region
      $region53: #{hands_discriminator_forward.5} parent=35 // pred_check
        %p483 = pneg %p140
      $region54: #{hands_discriminator_forward.5} parent=35 // pred_check_branch
        %485 = sbr.rel (%p483) target = $region56
      $region55: #{hands_discriminator_forward.5} parent=35 // pred_region
        %s486 = smul.u32 %s20, %s19
        %s487 = smul.u32 4, %s486
      $region56: #{hands_discriminator_forward.5} parent=35 // pred_fallthru
        _
    $region36: #{hands_discriminator_forward.5} parent=5 // pred_fallthru
      _
    %p488 = scmp.le.s32.totalorder 2, %s10
    // Predicated region
    $region57: #{hands_discriminator_forward.5} parent=5 // pred_check
      %p489 = pneg %p488
    $region58: #{hands_discriminator_forward.5} parent=5 // pred_check_branch
      %491 = sbr.rel (%p489) target = $region60
    $region59: #{hands_discriminator_forward.5} parent=5 // pred_region
      %s492 = ssub.s32 %s10, 2
      // Predicated region
      $region61: #{hands_discriminator_forward.5} parent=59 // pred_check
        %p493 = pneg %p146
      $region62: #{hands_discriminator_forward.5} parent=59 // pred_check_branch
        %495 = sbr.rel (%p493) target = $region64
      $region63: #{hands_discriminator_forward.5} parent=59 // pred_region
        %s496 = smul.u32 %s22, %s21
        %s497 = smul.u32 4, %s496
        %p498 = scmp.lt.s32.totalorder %s497, 3
        %s499 = scalar_select %p498, %s497, 3
        %s500 = smul.addr %s499, 4
        %s501 = scalar_lea.vmem %s4, %s500
      $region64: #{hands_discriminator_forward.5} parent=59 // pred_fallthru
        _
    $region60: #{hands_discriminator_forward.5} parent=5 // pred_fallthru
      _
  $region6: #{hands_discriminator_forward.5} parent=0 // loop_footer
    %s14 = sadd.s32 1, %s10
  $region7: #{hands_discriminator_forward.5} parent=0 // loop_footer_branch
    %9 = sbr.rel target = $region3
  $region8: #{hands_discriminator_forward.5} parent=0 // loop_exit
    _

// kernel: hands_discriminator_forward.6
$region0: #{hands_discriminator_forward.6}
  #allocation0 [shape = 'u32[]', space=smem, size = 0x4, offset = 0x4, fixed_abs, tag = 'smem constant byte address 0x4 - core index']
  #allocation1 [shape = 'u32[144,128]{1,0:T(1,128)}', space=vmem, size = 0x12000, scoped, tag = 'internal scratch']
  #allocation2 [shape = 'f32[16,12]{1,0:T(8,128)}', space=vmem, size = 0x2000, scoped, tag = 'scratch operand']
  #allocation3 [shape = 'f32[1,12]{1,0:T(1,128)}', space=vmem, size = 0x200, scoped, tag = 'scratch operand']
  #allocation4 [shape = 'f32[1,12]{1,0:T(1,128)}', space=vmem, size = 0x200, scoped, tag = 'scratch operand']
  #allocation5 [shape = 'f32[1,12]{1,0:T(1,128)}', space=vmem, size = 0x200, scoped, tag = 'scratch operand']
  #allocation6 [shape = 'f32[1,12]{1,0:T(1,128)}', space=vmem, size = 0x200, scoped, tag = 'scratch operand']
  %s0 = inlined_call_operand.vmem [shape: bf16[16,128], index: 0, kind: input, shape index: {}]
  %s1 = inlined_call_operand.vmem [shape: bf16[128,12], index: 1, kind: input, shape index: {}]
  %s2 = inlined_call_operand.vmem [shape: f32[1,12], index: 2, kind: input, shape index: {}]
  %s3 = inlined_call_operand.vmem [shape: f32[1,12], index: 3, kind: input, shape index: {}]
  %s4 = inlined_call_operand.vmem [shape: bf16[16,12], index: 4, kind: output, shape index: {}]
  %s5 = sld [smem:[#allocation0]]
  $region65: #{hands_discriminator_forward.6} parent=0
    _
  %s7 = ssub.s32 1, %s5
  %s8 = scalar_select 0, %s7, %s5
  loop: start=0, step=1, limit=4
  $region2: #{hands_discriminator_forward.6} parent=0 // loop_pre_header
    _
  $region3: #{hands_discriminator_forward.6} parent=0 // loop_header
    %s10 = sphi 0, %s14
    %p11 = scmp.ge.s32.totalorder %s10, 4
    %s17 = sphi 0, %s29
    %s18 = sphi 0, %s25
    %s19 = sphi 0, %s17
    %s20 = sphi 0, %s18
    %s21 = sphi 0, %s19
    %s22 = sphi 0, %s20
    %s36 = sphi 0, %s38
    %s39 = sphi 0, %s36
    %s40 = sphi 0, %s39
    %s56 = sphi 0, %s40
    %s60 = sphi 0, %s60
    %s62 = sphi 0, %s60
    %s63 = sphi 0, %s62
    %s77 = sphi 0, %s63
    %s81 = sphi 0, %s81
    %s83 = sphi 0, %s81
    %s84 = sphi 0, %s83
    %s98 = sphi 0, %s84
    %s102 = sphi 0, %s102
    %s104 = sphi 0, %s102
    %s105 = sphi 0, %s104
    %s119 = sphi 0, %s105
    %s127 = sphi 0, %s129
    %s130 = sphi 0, %s127
    %s131 = sphi 0, %s130
    %s147 = sphi 0, %s131
  $region4: #{hands_discriminator_forward.6} parent=0 // loop_header_branch
    %13 = sbr.rel (%p11) target = $region8
  $region5: #{hands_discriminator_forward.6} parent=0 // loop_body
    %s15 = ssub.s32 %s10, 1
    %s16 = ssub.s32 %s10, 2
    %s23 = sadd.s32 1, %s18
    %p24 = scmp.ge.s32.totalorder %s23, 1
    %s25 = scalar_select %p24, 0, %s23
    %s26 = sadd.s32 1, %s17
    %s27 = scalar_select %p24, %s26, %s17
    %p28 = scmp.ge.s32.totalorder %s27, 2
    %s29 = scalar_select %p28, 0, %s27
    %s30 = ssub.s32 1, %s17
    %s31 = smul.u32 %s18, %s30
    %s32 = ssub.s32 1, %s29
    %s33 = smul.u32 %s25, %s32
    %s34 = ssub.s32 %s31, %s33
    %p35 = scmp.eq.s32.totalorder %s34, 0
    %s37 = sadd.s32 %s36, 1
    %s38 = scalar_select %p35, %s36, %s37
    %p41 = pneg %p35
    %p42 = scmp.eq.s32.totalorder %s10, 1
    %p43 = por %p41, %p42
    %p44 = scmp.ne.s32.totalorder %s36, %s39
    %p45 = scmp.eq.s32.totalorder %s10, 0
    %p46 = por %p44, %p45
    %p47 = scmp.ne.s32.totalorder %s36, %s39
    %p48 = scmp.eq.s32.totalorder %s15, 1
    %p49 = por %p47, %p48
    %p50 = scmp.ne.s32.totalorder %s39, %s40
    %p51 = scmp.eq.s32.totalorder %s15, 0
    %p52 = por %p50, %p51
    %p53 = scmp.ne.s32.totalorder %s39, %s40
    %p54 = scmp.eq.s32.totalorder %s16, 1
    %p55 = por %p53, %p54
    %p57 = scmp.ne.s32.totalorder %s40, %s56
    %p58 = scmp.eq.s32.totalorder %s16, 0
    %p59 = por %p57, %p58
    %s61 = sadd.s32 %s60, 1
    %p64 = scmp.eq.s32.totalorder %s10, 1
    %p65 = scmp.ne.s32.totalorder %s60, %s62
    %p66 = scmp.eq.s32.totalorder %s10, 0
    %p67 = por %p65, %p66
    %p68 = scmp.ne.s32.totalorder %s60, %s62
    %p69 = scmp.eq.s32.totalorder %s15, 1
    %p70 = por %p68, %p69
    %p71 = scmp.ne.s32.totalorder %s62, %s63
    %p72 = scmp.eq.s32.totalorder %s15, 0
    %p73 = por %p71, %p72
    %p74 = scmp.ne.s32.totalorder %s62, %s63
    %p75 = scmp.eq.s32.totalorder %s16, 1
    %p76 = por %p74, %p75
    %p78 = scmp.ne.s32.totalorder %s63, %s77
    %p79 = scmp.eq.s32.totalorder %s16, 0
    %p80 = por %p78, %p79
    %s82 = sadd.s32 %s81, 1
    %p85 = scmp.eq.s32.totalorder %s10, 1
    %p86 = scmp.ne.s32.totalorder %s81, %s83
    %p87 = scmp.eq.s32.totalorder %s10, 0
    %p88 = por %p86, %p87
    %p89 = scmp.ne.s32.totalorder %s81, %s83
    %p90 = scmp.eq.s32.totalorder %s15, 1
    %p91 = por %p89, %p90
    %p92 = scmp.ne.s32.totalorder %s83, %s84
    %p93 = scmp.eq.s32.totalorder %s15, 0
    %p94 = por %p92, %p93
    %p95 = scmp.ne.s32.totalorder %s83, %s84
    %p96 = scmp.eq.s32.totalorder %s16, 1
    %p97 = por %p95, %p96
    %p99 = scmp.ne.s32.totalorder %s84, %s98
    %p100 = scmp.eq.s32.totalorder %s16, 0
    %p101 = por %p99, %p100
    %s103 = sadd.s32 %s102, 1
    %p106 = scmp.eq.s32.totalorder %s10, 1
    %p107 = scmp.ne.s32.totalorder %s102, %s104
    %p108 = scmp.eq.s32.totalorder %s10, 0
    %p109 = por %p107, %p108
    %p110 = scmp.ne.s32.totalorder %s102, %s104
    %p111 = scmp.eq.s32.totalorder %s15, 1
    %p112 = por %p110, %p111
    %p113 = scmp.ne.s32.totalorder %s104, %s105
    %p114 = scmp.eq.s32.totalorder %s15, 0
    %p115 = por %p113, %p114
    %p116 = scmp.ne.s32.totalorder %s104, %s105
    %p117 = scmp.eq.s32.totalorder %s16, 1
    %p118 = por %p116, %p117
    %p120 = scmp.ne.s32.totalorder %s105, %s119
    %p121 = scmp.eq.s32.totalorder %s16, 0
    %p122 = por %p120, %p121
    %s123 = smul.u32 %s18, %s17
    %s124 = smul.u32 %s25, %s29
    %s125 = ssub.s32 %s123, %s124
    %p126 = scmp.eq.s32.totalorder %s125, 0
    %s128 = sadd.s32 %s127, 1
    %s129 = scalar_select %p126, %s127, %s128
    %p132 = pneg %p126
    %p133 = scmp.eq.s32.totalorder %s10, 1
    %p134 = por %p132, %p133
    %p135 = scmp.ne.s32.totalorder %s127, %s130
    %p136 = scmp.eq.s32.totalorder %s10, 0
    %p137 = por %p135, %p136
    %p138 = scmp.ne.s32.totalorder %s127, %s130
    %p139 = scmp.eq.s32.totalorder %s15, 1
    %p140 = por %p138, %p139
    %p141 = scmp.ne.s32.totalorder %s130, %s131
    %p142 = scmp.eq.s32.totalorder %s15, 0
    %p143 = por %p141, %p142
    %p144 = scmp.ne.s32.totalorder %s130, %s131
    %p145 = scmp.eq.s32.totalorder %s16, 1
    %p146 = por %p144, %p145
    %p148 = scmp.ne.s32.totalorder %s131, %s147
    %p149 = scmp.eq.s32.totalorder %s16, 0
    %p150 = por %p148, %p149
    %p151 = scmp.le.s32.totalorder 1, %s10
    %p152 = scmp.lt.s32.totalorder %s10, 3
    %p153 = pnand %p151, %p152
    %p154 = pneg %p153
    // Predicated region
    $region9: #{hands_discriminator_forward.6} parent=5 // pred_check
      _
    $region10: #{hands_discriminator_forward.6} parent=5 // pred_check_branch
      %156 = sbr.rel (%p153) target = $region12
    $region11: #{hands_discriminator_forward.6} parent=5 // pred_region
      %s157 = ssub.s32 %s10, 1
      // Predicated region
      $region13: #{hands_discriminator_forward.6} parent=11 // pred_check
        %p158 = pneg %p73
      $region14: #{hands_discriminator_forward.6} parent=11 // pred_check_branch
        %160 = sbr.rel (%p158) target = $region16
      $region15: #{hands_discriminator_forward.6} parent=11 // pred_region
        _
      $region16: #{hands_discriminator_forward.6} parent=11 // pred_fallthru
        _
      // Predicated region
      $region17: #{hands_discriminator_forward.6} parent=11 // pred_check
        %p161 = pneg %p94
      $region18: #{hands_discriminator_forward.6} parent=11 // pred_check_branch
        %163 = sbr.rel (%p161) target = $region20
      $region19: #{hands_discriminator_forward.6} parent=11 // pred_region
        _
      $region20: #{hands_discriminator_forward.6} parent=11 // pred_fallthru
        _
      // Predicated region
      $region21: #{hands_discriminator_forward.6} parent=11 // pred_check
        %p164 = pneg %p115
      $region22: #{hands_discriminator_forward.6} parent=11 // pred_check_branch
        %166 = sbr.rel (%p164) target = $region24
      $region23: #{hands_discriminator_forward.6} parent=11 // pred_region
        _
      $region24: #{hands_discriminator_forward.6} parent=11 // pred_fallthru
        _
    $region12: #{hands_discriminator_forward.6} parent=5 // pred_fallthru
      _
    %p167 = scmp.lt.s32.totalorder %s10, 2
    // Predicated region
    $region25: #{hands_discriminator_forward.6} parent=5 // pred_check
      %p168 = pneg %p167
    $region26: #{hands_discriminator_forward.6} parent=5 // pred_check_branch
      %170 = sbr.rel (%p168) target = $region28
    $region27: #{hands_discriminator_forward.6} parent=5 // pred_region
      // Predicated region
      $region29: #{hands_discriminator_forward.6} parent=27 // pred_check
        %p171 = pneg %p46
      $region30: #{hands_discriminator_forward.6} parent=27 // pred_check_branch
        %173 = sbr.rel (%p171) target = $region32
      $region31: #{hands_discriminator_forward.6} parent=27 // pred_region
        %s174 = ssub.s32 1, %s17
        %s175 = smul.u32 %s18, %s174
        %s176 = smul.u32 2, %s175
        %p177 = scmp.lt.s32.totalorder %s176, 1
        %s178 = scalar_select %p177, %s176, 1
        %s179 = smul.addr %s178, 4
        %s180 = scalar_lea.vmem %s0, %s179
        %s181 = ssub.s32 1, %s17
        %s182 = smul.u32 %s18, %s181
        %s183 = smul.u32 2, %s182
      $region32: #{hands_discriminator_forward.6} parent=27 // pred_fallthru
        _
    $region28: #{hands_discriminator_forward.6} parent=5 // pred_fallthru
      _
    %p184 = scmp.le.s32.totalorder 1, %s10
    %p185 = scmp.lt.s32.totalorder %s10, 3
    %p186 = pnand %p184, %p185
    %p187 = pneg %p186
    // Predicated region
    $region33: #{hands_discriminator_forward.6} parent=5 // pred_check
      _
    $region34: #{hands_discriminator_forward.6} parent=5 // pred_check_branch
      %189 = sbr.rel (%p186) target = $region36
    $region35: #{hands_discriminator_forward.6} parent=5 // pred_region
      %s190 = ssub.s32 %s10, 1
      %s191 = ssub.s32 1, %s19
      %s192 = smul.u32 %s20, %s191
      %s193 = smul.u32 2, %s192
      %p194 = scmp.lt.s32.totalorder %s193, 1
      %s195 = scalar_select %p194, %s193, 1
      %s196 = smul.addr %s195, 4
      %s197 = scalar_lea.vmem %s0, %s196
      %p198 = pneg %p52
      %p199 = pneg %p49
      %p200 = pneg %p73
      %p201 = pneg %p70
      %p202 = pneg %p94
      %p203 = pneg %p91
      %p204 = pneg %p115
      %p205 = pneg %p112
      %p206 = pneg %p143
      %p207 = pneg %p140
      %s208 = smul.u32 %s20, %s19
      %s209 = smul.u32 2, %s208
      %p210 = scmp.lt.s32.totalorder %s209, 1
      %s211 = scalar_select %p210, %s209, 1
      %s212 = smul.addr %s211, 4
      %s213 = scalar_lea.vmem %s4, %s212
      %s214 = ssub.s32 1, %s19
      %s215 = smul.u32 %s20, %s214
      %s216 = smul.u32 2, %s215
      %p217 = scmp.lt.s32.totalorder %s216, 1
      %s218 = scalar_select %p217, %s216, 1
      %s219 = smul.addr %s218, 4
      %s220 = scalar_lea.vmem %s0, %s219
      %s221 = ssub.s32 1, %s19
      %s222 = smul.u32 %s20, %s221
      %s223 = smul.u32 2, %s222
      %s224 = smul.u32 %s20, %s19
      %s225 = smul.u32 2, %s224
      %p226 = scmp.lt.s32.totalorder %s225, 1
      %s227 = scalar_select %p226, %s225, 1
      %s228 = smul.addr %s227, 4
      %s229 = scalar_lea.vmem %s4, %s228
      %s230 = smul.u32 %s20, %s19
      %s231 = smul.u32 2, %s230
      %p233 = scmp.eq.s32.totalorder %s19, 0
      %p234 = scmp.eq.s32.totalorder %s20, 0
      %p235 = pnand %p233, %p234
      %p236 = pneg %p235
      // Predicated region
      $region37: #{hands_discriminator_forward.6} parent=35 // pred_check
        _
      $region38: #{hands_discriminator_forward.6} parent=35 // pred_check_branch
        %238 = sbr.rel (%p235) target = $region40
      $region39: #{hands_discriminator_forward.6} parent=35 // pred_region
        %vm239 = vcmask 90112
        %240 = vst.msk [vmem:[#allocation3] sm:$0x1] %vm239, 0.0
        %241 = vst.msk [vmem:[#allocation4] sm:$0x1] %vm239, 0.0
      $region40: #{hands_discriminator_forward.6} parent=35 // pred_fallthru
        _
      // Predicated region
      $region41: #{hands_discriminator_forward.6} parent=35 // pred_check
        %p242 = pneg %p233
      $region42: #{hands_discriminator_forward.6} parent=35 // pred_check_branch
        %244 = sbr.rel (%p242) target = $region44
      $region43: #{hands_discriminator_forward.6} parent=35 // pred_region
        %v245 = vld [vmem:[%s220] sm:$0xf]
        %v246 = vld [vmem:[%s220 + $0x4] sm:$0xf]
        %v247 = vld [vmem:[%s1] sm:$0xf]
        %v248 = vld [vmem:[%s1 + $0x4] sm:$0xf]
        %v249 = vld [vmem:[%s1 + $0x8] sm:$0xf]
        %v250 = vld [vmem:[%s1 + $0xc] sm:$0xf]
        %v251 = vld [vmem:[%s1 + $0x10] sm:$0xf]
        %v252 = vld [vmem:[%s1 + $0x14] sm:$0xf]
        %v253 = vld [vmem:[%s1 + $0x18] sm:$0xf]
        %v254 = vld [vmem:[%s1 + $0x1c] sm:$0xf]
        %v255 = vld [vmem:[%s1 + $0x20] sm:$0xf]
        %v256 = vld [vmem:[%s1 + $0x24] sm:$0xf]
        %v257 = vld [vmem:[%s1 + $0x28] sm:$0xf]
        %v258 = vld [vmem:[%s1 + $0x2c] sm:$0xf]
        %v259 = vld [vmem:[%s1 + $0x30] sm:$0xf]
        %v260 = vld [vmem:[%s1 + $0x34] sm:$0xf]
        %v261 = vld [vmem:[%s1 + $0x38] sm:$0xf]
        %v262 = vld [vmem:[%s1 + $0x3c] sm:$0xf]
        %v265 = vunpack.c.l.b16 %v245
        %v266 = vunpack.c.l.b16 %v246
        %v267 = vpack.c.b16 %v266, %v265
        %v285 = vunpack.c.l.b16 %v247
        %v286 = vunpack.c.l.b16 %v248
        %v287 = vunpack.c.l.b16 %v249
        %v288 = vunpack.c.l.b16 %v250
        %v289 = vunpack.c.l.b16 %v251
        %v290 = vunpack.c.l.b16 %v252
        %v291 = vunpack.c.l.b16 %v253
        %v292 = vunpack.c.l.b16 %v254
        %v293 = vunpack.c.l.b16 %v255
        %v294 = vunpack.c.l.b16 %v256
        %v295 = vunpack.c.l.b16 %v257
        %v296 = vunpack.c.l.b16 %v258
        %v297 = vunpack.c.l.b16 %v259
        %v298 = vunpack.c.l.b16 %v260
        %v299 = vunpack.c.l.b16 %v261
        %v300 = vunpack.c.l.b16 %v262
        %v301 = vpack.c.b16 %v286, %v285
        %v302 = vpack.c.b16 %v288, %v287
        %v303 = vpack.c.b16 %v290, %v289
        %v304 = vpack.c.b16 %v292, %v291
        %v305 = vpack.c.b16 %v294, %v293
        %v306 = vpack.c.b16 %v296, %v295
        %v307 = vpack.c.b16 %v298, %v297
        %v308 = vpack.c.b16 %v300, %v299
        %317 = vmatprep.subr.bf16.mxu0 0
        %318 = vmatpush1.bf16.msra.mxu0 %v308
        %319 = vmatprep.subr.bf16.mxu0 0
        %320 = vmatpush1.bf16.msra.mxu0 %v307
        %321 = vmatprep.subr.bf16.mxu0 0
        %322 = vmatpush1.bf16.msra.mxu0 %v306
        %323 = vmatprep.subr.bf16.mxu0 0
        %324 = vmatpush1.bf16.msra.mxu0 %v305
        %325 = vmatprep.subr.bf16.mxu0 0
        %326 = vmatpush1.bf16.msra.mxu0 %v304
        %327 = vmatprep.subr.bf16.mxu0 0
        %328 = vmatpush1.bf16.msra.mxu0 %v303
        %329 = vmatprep.subr.bf16.mxu0 0
        %330 = vmatpush1.bf16.msra.mxu0 %v302
        %331 = vmatprep.subr.bf16.mxu0 0
        %332 = vmatpush1.bf16.msra.mxu0 %v301
        %333 = vmatprep.subr.bf16.mxu0 0
        %334 = vmatpush2.bf16.msra.mxu0 0
        %335 = vmatprep.subr.bf16.mxu0 0
        %336 = vmatpush2.bf16.msra.mxu0 0
        %337 = vmatprep.subr.bf16.mxu0 0
        %338 = vmatpush2.bf16.msra.mxu0 0
        %339 = vmatprep.subr.bf16.mxu0 0
        %340 = vmatpush2.bf16.msra.mxu0 0
        %341 = vmatprep.subr.bf16.mxu0 0
        %342 = vmatpush2.bf16.msra.mxu0 0
        %343 = vmatprep.subr.bf16.mxu0 0
        %344 = vmatpush2.bf16.msra.mxu0 0
        %345 = vmatprep.subr.bf16.mxu0 0
        %346 = vmatpush2.bf16.msra.mxu0 0
        %347 = vmatprep.subr.bf16.mxu0 0
        %348 = vmatpush2.bf16.msra.mxu0 0
        %349 = vmatprep.mubr.bf16.mxu0 0
        %350 = vmatmul.mubr.bf16.gmra.mxu0 %v267
        %v351 = vpop.f32.mrf.mxu0
        %v352 = vadd.f32 0.0, %v351
        %v353 = vpop.f32.mrf.mxu0
        %v354 = vpop.f32.mrf.mxu0
        %v355 = vadd.f32 0.0, %v354
        %v356 = vpop.f32.mrf.mxu0
        %357 = vdwg.mxu0
        %s358 = smul.u32 %s20, 16
        %s359 = scalar_lea.vmem [#allocation2], %s358
        %vm360 = vcmask 97280
        %361 = vst.msk [vmem:[%s359] sm:$0xff] %vm360, %v352
        %362 = vst.msk [vmem:[%s359 + $0x8] sm:$0xff] %vm360, %v355
        %v363 = vld [vmem:[#allocation3] sm:$0x1]
        %v364 = vsel %vm360, %v352, 0.0
        %v365 = vsel %vm360, %v355, 0.0
        %v366 = vadd.f32 %v364, %v365
        %v367 = vrot.slane %v366, 4
        %v368 = vadd.f32 %v366, %v367
        %v369 = vrot.slane %v368, 2
        %v370 = vadd.f32 %v368, %v369
        %v371 = vrot.slane %v370, 1
        %v372 = vadd.f32 %v370, %v371
        %v373 = vadd.f32 %v363, %v372
        %vm374 = vcmask 90112
        %375 = vst.msk [vmem:[#allocation3] sm:$0x1] %vm374, %v373
        %v376 = vld [vmem:[#allocation4] sm:$0x1]
        %v377 = vmul.f32 %v352, %v352
        %v378 = vmul.f32 %v355, %v355
        %v379 = vsel %vm360, %v377, 0.0
        %v380 = vsel %vm360, %v378, 0.0
        %v381 = vadd.f32 %v379, %v380
        %v382 = vrot.slane %v381, 4
        %v383 = vadd.f32 %v381, %v382
        %v384 = vrot.slane %v383, 2
        %v385 = vadd.f32 %v383, %v384
        %v386 = vrot.slane %v385, 1
        %v387 = vadd.f32 %v385, %v386
        %v388 = vadd.f32 %v376, %v387
        %389 = vst.msk [vmem:[#allocation4] sm:$0x1] %vm374, %v388
      $region44: #{hands_discriminator_forward.6} parent=35 // pred_fallthru
        _
      %p390 = scmp.eq.s32.totalorder %s19, 1
      %p391 = pnand %p390, %p234
      %p392 = pneg %p391
      // Predicated region
      $region45: #{hands_discriminator_forward.6} parent=35 // pred_check
        _
      $region46: #{hands_discriminator_forward.6} parent=35 // pred_check_branch
        %394 = sbr.rel (%p391) target = $region48
      $region47: #{hands_discriminator_forward.6} parent=35 // pred_region
        %v395 = vld [vmem:[#allocation3] sm:$0x1]
        %v396 = vmul.f32 %v395, 0.125
        %v397 = vld [vmem:[#allocation4] sm:$0x1]
        %v398 = vmul.f32 %v397, 0.125
        %v399 = vmul.f32 %v396, %v396
        %v400 = vsub.f32 %v398, %v399
        %v401 = vmax.f32 %v400, 0.0
        %v402 = vadd.f32 %v401, 1e-05
        %v403 = vrsqrt.pop %v402
        %v404 = vld [vmem:[%s2] sm:$0x1]
        %v405 = vmul.f32 %v404, %v403
        %vm406 = vcmask 90112
        %407 = vst.msk [vmem:[#allocation5] sm:$0x1] %vm406, %v405
        %v408 = vld [vmem:[%s3] sm:$0x1]
        %v409 = vmul.f32 %v396, %v405
        %v410 = vsub.f32 %v408, %v409
        %411 = vst.msk [vmem:[#allocation6] sm:$0x1] %vm406, %v410
      $region48: #{hands_discriminator_forward.6} parent=35 // pred_fallthru
        _
      // Predicated region
      $region49: #{hands_discriminator_forward.6} parent=35 // pred_check
        %p412 = pneg %p390
      $region50: #{hands_discriminator_forward.6} parent=35 // pred_check_branch
        %414 = sbr.rel (%p412) target = $region52
      $region51: #{hands_discriminator_forward.6} parent=35 // pred_region
        %s415 = smul.u32 %s20, 16
        %s416 = scalar_lea.vmem [#allocation2], %s415
        %v417 = vld [vmem:[%s416] sm:$0xff]
        %v418 = vld [vmem:[%s416 + $0x8] sm:$0xff]
        %v419 = vld [vmem:[#allocation5] sm:$0x1]
        %v421 = vlaneseq
        %v422 = vshrl.u32 %v421, 7
        %v423 = vsub.s32 0, %v422
        %v424 = vrot.slane %v419, %v423
        %v426 = vmul.f32 %v417, %v424
        %v427 = vmul.f32 %v418, %v424
        %v428 = vld [vmem:[#allocation6] sm:$0x1]
        %v430 = vlaneseq
        %v431 = vshrl.u32 %v430, 7
        %v432 = vsub.s32 0, %v431
        %v433 = vrot.slane %v428, %v432
        %v435 = vadd.f32 %v426, %v433
        %v436 = vadd.f32 %v427, %v433
        %vm437 = vcmp.ge.f32.partialorder %v435, 0.0
        %vm438 = vcmp.ge.f32.partialorder %v436, 0.0
        %v439 = vmul.f32 %v435, 0.2
        %v440 = vmul.f32 %v436, 0.2
        %v441 = vsel %vm437, %v435, %v439
        %v442 = vsel %vm438, %v436, %v440
        %v443 = vpack.c.bf16 %v442, %v441
        %v445 = vunpack.c.l.b16 %v443
        %v446 = vunpack.c.h.b16 %v443
        %v447 = vpack.c.b16 %v445, %v445
        %v448 = vpack.c.b16 %v446, %v446
        %vm451 = vcmask 93184
        %452 = vst.msk [vmem:[%s229] sm:$0xf] %vm451, %v447
        %453 = vst.msk [vmem:[%s229 + $0x4] sm:$0xf] %vm451, %v448
      $region52: #{hands_discriminator_forward.6} parent=35 // pred_fallthru
        _
      %s454 = smul.u32 %s20, %s19
      %s455 = smul.u32 2, %s454
      %p456 = scmp.lt.s32.totalorder %s455, 1
      %s457 = scalar_select %p456, %s455, 1
      %s458 = smul.addr %s457, 4
      %s459 = scalar_lea.vmem %s4, %s458
      // Predicated region
      $region53: #{hands_discriminator_forward.6} parent=35 // pred_check
        %p460 = pneg %p140
      $region54: #{hands_discriminator_forward.6} parent=35 // pred_check_branch
        %462 = sbr.rel (%p460) target = $region56
      $region55: #{hands_discriminator_forward.6} parent=35 // pred_region
        %s463 = smul.u32 %s20, %s19
        %s464 = smul.u32 2, %s463
      $region56: #{hands_discriminator_forward.6} parent=35 // pred_fallthru
        _
    $region36: #{hands_discriminator_forward.6} parent=5 // pred_fallthru
      _
    %p465 = scmp.le.s32.totalorder 2, %s10
    // Predicated region
    $region57: #{hands_discriminator_forward.6} parent=5 // pred_check
      %p466 = pneg %p465
    $region58: #{hands_discriminator_forward.6} parent=5 // pred_check_branch
      %468 = sbr.rel (%p466) target = $region60
    $region59: #{hands_discriminator_forward.6} parent=5 // pred_region
      %s469 = ssub.s32 %s10, 2
      // Predicated region
      $region61: #{hands_discriminator_forward.6} parent=59 // pred_check
        %p470 = pneg %p146
      $region62: #{hands_discriminator_forward.6} parent=59 // pred_check_branch
        %472 = sbr.rel (%p470) target = $region64
      $region63: #{hands_discriminator_forward.6} parent=59 // pred_region
        %s473 = smul.u32 %s22, %s21
        %s474 = smul.u32 2, %s473
        %p475 = scmp.lt.s32.totalorder %s474, 1
        %s476 = scalar_select %p475, %s474, 1
        %s477 = smul.addr %s476, 4
        %s478 = scalar_lea.vmem %s4, %s477
      $region64: #{hands_discriminator_forward.6} parent=59 // pred_fallthru
        _
    $region60: #{hands_discriminator_forward.6} parent=5 // pred_fallthru
      _
  $region6: #{hands_discriminator_forward.6} parent=0 // loop_footer
    %s14 = sadd.s32 1, %s10
  $region7: #{hands_discriminator_forward.6} parent=0 // loop_footer_branch
    %9 = sbr.rel target = $region3
  $region8: #{hands_discriminator_forward.6} parent=0 // loop_exit
    _

// kernel: hands_discriminator_forward.7
$region0: #{hands_discriminator_forward.7}
  #allocation0 [shape = 'u32[]', space=smem, size = 0x4, offset = 0x4, fixed_abs, tag = 'smem constant byte address 0x4 - core index']
  #allocation1 [shape = 'u32[144,128]{1,0:T(1,128)}', space=vmem, size = 0x12000, scoped, tag = 'internal scratch']
  %s0 = inlined_call_operand.vmem [shape: bf16[8,192], index: 0, kind: input, shape index: {}]
  %s1 = inlined_call_operand.vmem [shape: bf16[192,1], index: 1, kind: input, shape index: {}]
  %s2 = inlined_call_operand.vmem [shape: f32[8,1], index: 2, kind: output, shape index: {}]
  %s3 = sld [smem:[#allocation0]]
  $region18: #{hands_discriminator_forward.7} parent=0
    _
  %s5 = ssub.s32 1, %s3
  %s6 = scalar_select 0, %s5, %s3
  // Predicated region
  $region2: #{hands_discriminator_forward.7} parent=0 // pred_check
    _
  $region3: #{hands_discriminator_forward.7} parent=0 // pred_check_branch
    %8 = sbr.rel (0) target = $region5
  $region4: #{hands_discriminator_forward.7} parent=0 // pred_region
    _
  $region5: #{hands_discriminator_forward.7} parent=0 // pred_fallthru
    _
  // Predicated region
  $region6: #{hands_discriminator_forward.7} parent=0 // pred_check
    _
  $region7: #{hands_discriminator_forward.7} parent=0 // pred_check_branch
    %10 = sbr.rel (0) target = $region9
  $region8: #{hands_discriminator_forward.7} parent=0 // pred_region
    _
  $region9: #{hands_discriminator_forward.7} parent=0 // pred_fallthru
    _
  %v12 = vld [vmem:[%s0] sm:$0xff]
  %v13 = vld [vmem:[%s1] sm:$0xf]
  %v14 = vld [vmem:[%s1 + $0x4] sm:$0xf]
  %v15 = vld [vmem:[%s1 + $0x8] sm:$0xf]
  %v16 = vld [vmem:[%s1 + $0xc] sm:$0xf]
  %v17 = vld [vmem:[%s1 + $0x10] sm:$0xf]
  %v18 = vld [vmem:[%s1 + $0x14] sm:$0xf]
  %v19 = vld [vmem:[%s1 + $0x18] sm:$0xf]
  %v20 = vld [vmem:[%s1 + $0x1c] sm:$0xf]
  %v21 = vld [vmem:[%s1 + $0x20] sm:$0xf]
  %v22 = vld [vmem:[%s1 + $0x24] sm:$0xf]
  %v23 = vld [vmem:[%s1 + $0x28] sm:$0xf]
  %v24 = vld [vmem:[%s1 + $0x2c] sm:$0xf]
  %v25 = vld [vmem:[%s1 + $0x30] sm:$0xf]
  %v26 = vld [vmem:[%s1 + $0x34] sm:$0xf]
  %v27 = vld [vmem:[%s1 + $0x38] sm:$0xf]
  %v28 = vld [vmem:[%s1 + $0x3c] sm:$0xf]
  %v29 = vld [vmem:[%s1 + $0x40] sm:$0xf]
  %v30 = vld [vmem:[%s1 + $0x44] sm:$0xf]
  %v31 = vld [vmem:[%s1 + $0x48] sm:$0xf]
  %v32 = vld [vmem:[%s1 + $0x4c] sm:$0xf]
  %v33 = vld [vmem:[%s1 + $0x50] sm:$0xf]
  %v34 = vld [vmem:[%s1 + $0x54] sm:$0xf]
  %v35 = vld [vmem:[%s1 + $0x58] sm:$0xf]
  %v36 = vld [vmem:[%s1 + $0x5c] sm:$0xf]
  %v38 = vunpack.c.l.b16 %v12
  %v39 = vunpack.c.h.b16 %v12
  %v40 = vpack.c.b16 %v38, %v38
  %v41 = vpack.c.b16 %v39, %v39
  %v67 = vunpack.c.l.b16 %v13
  %v68 = vunpack.c.l.b16 %v14
  %v69 = vunpack.c.l.b16 %v15
  %v70 = vunpack.c.l.b16 %v16
  %v71 = vunpack.c.l.b16 %v17
  %v72 = vunpack.c.l.b16 %v18
  %v73 = vunpack.c.l.b16 %v19
  %v74 = vunpack.c.l.b16 %v20
  %v75 = vunpack.c.l.b16 %v21
  %v76 = vunpack.c.l.b16 %v22
  %v77 = vunpack.c.l.b16 %v23
  %v78 = vunpack.c.l.b16 %v24
  %v79 = vunpack.c.l.b16 %v25
  %v80 = vunpack.c.l.b16 %v26
  %v81 = vunpack.c.l.b16 %v27
  %v82 = vunpack.c.l.b16 %v28
  %v83 = vunpack.c.l.b16 %v29
  %v84 = vunpack.c.l.b16 %v30
  %v85 = vunpack.c.l.b16 %v31
  %v86 = vunpack.c.l.b16 %v32
  %v87 = vunpack.c.l.b16 %v33
  %v88 = vunpack.c.l.b16 %v34
  %v89 = vunpack.c.l.b16 %v35
  %v90 = vunpack.c.l.b16 %v36
  %v91 = vpack.c.b16 %v68, %v67
  %v92 = vpack.c.b16 %v70, %v69
  %v93 = vpack.c.b16 %v72, %v71
  %v94 = vpack.c.b16 %v74, %v73
  %v95 = vpack.c.b16 %v76, %v75
  %v96 = vpack.c.b16 %v78, %v77
  %v97 = vpack.c.b16 %v80, %v79
  %v98 = vpack.c.b16 %v82, %v81
  %v99 = vpack.c.b16 %v84, %v83
  %v100 = vpack.c.b16 %v86, %v85
  %v101 = vpack.c.b16 %v88, %v87
  %v102 = vpack.c.b16 %v90, %v89
  %vm115 = vcmask 523264
  %v117 = vsel %vm115, %v41, 0
  %119 = vmatprep.subr.bf16.mxu0 0
  %120 = vmatpush1.bf16.msra.mxu0 %v98
  %121 = vmatprep.subr.bf16.mxu0 0
  %122 = vmatpush1.bf16.msra.mxu0 %v97
  %123 = vmatprep.subr.bf16.mxu0 0
  %124 = vmatpush1.bf16.msra.mxu0 %v96
  %125 = vmatprep.subr.bf16.mxu0 0
  %126 = vmatpush1.bf16.msra.mxu0 %v95
  %127 = vmatprep.subr.bf16.mxu0 0
  %128 = vmatpush1.bf16.msra.mxu0 %v94
  %129 = vmatprep.subr.bf16.mxu0 0
  %130 = vmatpush1.bf16.msra.mxu0 %v93
  %131 = vmatprep.subr.bf16.mxu0 0
  %132 = vmatpush1.bf16.msra.mxu0 %v92
  %133 = vmatprep.subr.bf16.mxu0 0
  %134 = vmatpush1.bf16.msra.mxu0 %v91
  %135 = vmatprep.subr.bf16.mxu0 0
  %136 = vmatpush2.bf16.msra.mxu0 0
  %137 = vmatprep.subr.bf16.mxu0 0
  %138 = vmatpush2.bf16.msra.mxu0 0
  %139 = vmatprep.subr.bf16.mxu0 0
  %140 = vmatpush2.bf16.msra.mxu0 0
  %141 = vmatprep.subr.bf16.mxu0 0
  %142 = vmatpush2.bf16.msra.mxu0 0
  %143 = vmatprep.subr.bf16.mxu0 0
  %144 = vmatpush2.bf16.msra.mxu0 %v102
  %145 = vmatprep.subr.bf16.mxu0 0
  %146 = vmatpush2.bf16.msra.mxu0 %v101
  %147 = vmatprep.subr.bf16.mxu0 0
  %148 = vmatpush2.bf16.msra.mxu0 %v100
  %149 = vmatprep.subr.bf16.mxu0 0
  %150 = vmatpush2.bf16.msra.mxu0 %v99
  %151 = vmatprep.mubr.bf16.mxu0 %v117
  %152 = vmatmul.mubr.bf16.gmra.mxu0 %v40
  %v153 = vpop.f32.mrf.mxu0
  %v154 = vadd.f32 0.0, %v153
  %v155 = vpop.f32.mrf.mxu0
  %v156 = vpop.f32.mrf.mxu0
  %v157 = vpop.f32.mrf.mxu0
  %158 = vdwg.mxu0
  %v159 = vxor.u32 %v154, 2147483648
  %v160 = vmul.f32 %v159, 1.442695
  %v161 = vpow.pop %v160
  %v162 = vadd.f32 %v161, 1.0
  %v163 = vrcp.pop %v162
  %v164 = vmul.f32 1.0, %v163
  %vm165 = vcmask 7168
  %166 = vst.msk [vmem:[%s2] sm:$0xff] %vm165, %v164
  // Predicated region
  $region10: #{hands_discriminator_forward.7} parent=0 // pred_check
    _
  $region11: #{hands_discriminator_forward.7} parent=0 // pred_check_branch
    %168 = sbr.rel (0) target = $region13
  $region12: #{hands_discriminator_forward.7} parent=0 // pred_region
    _
  $region13: #{hands_discriminator_forward.7} parent=0 // pred_fallthru
    _
  // Predicated region
  $region14: #{hands_discriminator_forward.7} parent=0 // pred_check
    _
  $region15: #{hands_discriminator_forward.7} parent=0 // pred_check_branch
    %170 = sbr.rel (0) target = $region17
  $region16: #{hands_discriminator_forward.7} parent=0 // pred_region
    _
  $region17: #{hands_discriminator_forward.7} parent=0 // pred_fallthru
    _

</llo_original>
